<compile_context>
chip_gen: v7x
topology: tpu7x:2x2x1
jax: 0.10.0
libtpu: 0.0.40
codegen_flags: <defaults>
</compile_context>

<pallas_src>
import functools

import jax
import jax.numpy as jnp
from jax import lax
from jax.experimental import pallas as pl
from jax.experimental.pallas import tpu as pltpu


# ----------------------------------------------------------------------------
# small helpers used *inside* kernels (pure jnp, traced into the kernel body)
# ----------------------------------------------------------------------------
def _layernorm(x, g, b, eps=1e-5):
    mean = jnp.mean(x, axis=-1, keepdims=True)
    cen = x - mean
    var = jnp.mean(cen * cen, axis=-1, keepdims=True)
    return cen * lax.rsqrt(var + eps) * g + b


def _relu(x):
    return jnp.maximum(x, 0.0)


def _dot(a, b):
    return jnp.dot(a, b, preferred_element_type=jnp.float32)


def _dot_nt(a, b):
    # contract the LAST dim of both operands: (M, K) x (N, K) -> (M, N)
    return lax.dot_general(a, b, (((1,), (1,)), ((), ())),
                           preferred_element_type=jnp.float32)


# ----------------------------------------------------------------------------
# Kernel 1: q/kv projection + LN, per-image attention scores (computed ONCE),
#           and the whole main regressor branch (reg_ln -> token sum -> MLP).
#   outputs : kv_ln (B*N, D), scores (B*N, H*nq), x_out (B, 1)
# ----------------------------------------------------------------------------
def _fused_prep_regressor_kernel(
        x_ref, reg_ref, repq_ref, hmask_ref,
        wq_ref, bq_ref, lnqg_ref, lnqb_ref,
        wkv_ref, bkv_ref, lnkvg_ref, lnkvb_ref,
        reglng_ref, reglnb_ref,
        mw1_ref, mb1_ref, mln1g_ref, mln1b_ref,
        mw2_ref, mb2_ref, mln2g_ref, mln2b_ref,
        mwh_ref, mbh_ref,
        kv_out_ref, s_out_ref, xout_ref,
        *, scale, batch_size, n_tokens):
    x = x_ref[...]                                                   # (B*N, D)

    # --- MultiHeadRankawareAttentionV2: kv_proj + ln_kv --------------------
    kv = _layernorm(_dot(x, wkv_ref[...]) + bkv_ref[...],
                    lnkvg_ref[...], lnkvb_ref[...])
    kv_out_ref[...] = kv

    # --- q_proj + ln_q on reg tokens; replicate per head & mask head cols --
    q = _layernorm(_dot(reg_ref[...], wq_ref[...]) + bq_ref[...],
                   lnqg_ref[...], lnqb_ref[...])                     # (nq, D)
    qm = _dot(repq_ref[...], q) * hmask_ref[...]                     # (H*nq, D)
    # per-head scores q.k for EVERY image, computed once (O(B), not O(B^2)):
    #   scores[b*N+n, h*nq+q] = scale * <q_q, k_{b,n}> restricted to head h
    s_out_ref[...] = scale * _dot_nt(kv, qm)                         # (B*N, H*nq)

    # --- main branch: reg_ln per token, per-image token sum, MLPLayer ------
    xl = _layernorm(x, reglng_ref[...], reglnb_ref[...])             # (B*N, D)
    xs = jnp.sum(xl.reshape(batch_size, n_tokens, xl.shape[-1]), axis=1)  # (B, D)
    h1 = _relu(_layernorm(_dot(xs, mw1_ref[...]) + mb1_ref[...],
                          mln1g_ref[...], mln1b_ref[...]))
    h2 = _relu(_layernorm(_dot(h1, mw2_ref[...]) + mb2_ref[...],
                          mln2g_ref[...], mln2b_ref[...]))
    xout_ref[...] = _dot(h2, mwh_ref[...]) + mbh_ref[...]            # (B, 1)


# ----------------------------------------------------------------------------
# Kernel 2: per-pair softmax combine + value reduce + out_proj + PairwiseDiff
#   grid = (B,) over image i ("parallel"); scores/kv stay resident (constant
#   index maps) and are sliced per image with pl.ds.  The inner j loop is a
#   pl.loop writing rows into a (B, D) VMEM scratch.
# ----------------------------------------------------------------------------
def _pair_rank_attention_kernel(
        s_ref, kv_ref, hmask_ref,
        wo_ref, bo_ref,
        ln0g_ref, ln0b_ref,
        w1_ref, b1_ref, ln1g_ref, ln1b_ref,
        w2_ref, b2_ref, ln2g_ref, ln2b_ref,
        w3_ref, b3_ref, ln3g_ref, ln3b_ref,
        whT_ref, bh_ref,
        out_ref,
        pooled_ref,
        *, n_query, batch_size, n_tokens):
    i = pl.program_id(0)
    E = hmask_ref[...]                  # (H*nq, D): query-sum + head selection

    def img_slice(ref, idx):
        off = idx * n_tokens
        if n_tokens % 8 == 0:           # sublane-aligned slice hint
            off = pl.multiple_of(off, n_tokens)
        return ref[pl.ds(off, n_tokens), :]

    kv_i = img_slice(kv_ref, i)                                      # (N, D)
    s_i = img_slice(s_ref, i)                                        # (N, H*nq)
    m_i = jnp.max(s_i, axis=0, keepdims=True)                        # (1, H*nq)

    @pl.loop(0, batch_size)
    def _(j):
        kv_j = img_slice(kv_ref, j)
        s_j = img_slice(s_ref, j)
        # softmax per (head, query) column over the concatenated [i | j] keys
        m = jnp.maximum(m_i, jnp.max(s_j, axis=0, keepdims=True))    # (1, H*nq)
        e1 = jnp.exp(s_i - m)
        e2 = jnp.exp(s_j - m)
        inv = pl.reciprocal(jnp.sum(e1 + e2, axis=0, keepdims=True),
                            approx=True)                             # (1, H*nq)
        # fold reg-token sum + head selection into one small constant matmul,
        # then reduce against the raw kv on the VPU/XLU (no zero-padded keys).
        a1 = _dot(e1 * inv, E)                                       # (N, D)
        a2 = _dot(e2 * inv, E)                                       # (N, D)
        v = jnp.sum(a1 * kv_i - a2 * kv_j, axis=0, keepdims=True)    # (1, D)
        pooled_ref[pl.ds(j, 1), :] = v

    pooled = pooled_ref[...]                                         # (B, D)
    # out_proj; bias accumulates n_query times because out_proj is linear and
    # the reg-token sum was pushed in front of it (reference sums afterwards).
    pooled = _dot(pooled, wo_ref[...]) + n_query * bo_ref[...]

    # --- PairwiseDiffBlockV2 fused: LN -> [Linear, LN, ReLU] x3 -> head -----
    y = _layernorm(pooled, ln0g_ref[...], ln0b_ref[...])
    y = _relu(_layernorm(_dot(y, w1_ref[...]) + b1_ref[...],
                         ln1g_ref[...], ln1b_ref[...]))
    y = _relu(_layernorm(_dot(y, w2_ref[...]) + b2_ref[...],
                         ln2g_ref[...], ln2b_ref[...]))
    y = _relu(_layernorm(_dot(y, w3_ref[...]) + b3_ref[...],
                         ln3g_ref[...], ln3b_ref[...]))
    # lane-dense output row: (1, D) x (B, D) contracted over D -> (1, B)
    row = _dot_nt(whT_ref[...], y) + bh_ref[...]                     # (1, B)
    out_ref[...] = row[None, :, :]                                   # (1, 1, B)


def _const_spec(shape):
    zeros = (0,) * len(shape)
    return pl.BlockSpec(shape, lambda i, _z=zeros: _z)


# ----------------------------------------------------------------------------
# Forward pass (2 pallas_calls total)
# ----------------------------------------------------------------------------
def rank_adapter_v2_forward(image_embeddings, text_embeddings, params):
    del text_embeddings  # crossmodal_block is Identity ('null' fusion)
    b, n, d = image_embeddings.shape
    p = params
    h = p["num_heads"]
    dh = d // h
    nq = p["reg_tokens"].shape[0]
    hnq = h * nq

    x2 = image_embeddings.reshape(b * n, d)

    # tiny constant matrices (folded by XLA at compile time):
    #   repq     (H*nq, nq): replicates each reg-token query once per head
    #   headmask (H*nq, D) : 1 where column d belongs to head r // nq; used as
    #                        the q-mask in kernel 1 and as the query-sum /
    #                        head-selector E in kernel 2.
    repq = ((jnp.arange(hnq)[:, None] % nq) == jnp.arange(nq)[None, :]
            ).astype(jnp.float32)
    headmask = ((jnp.arange(hnq)[:, None] // nq) ==
                (jnp.arange(d)[None, :] // dh)).astype(jnp.float32)

    def r2(v):
        return v.reshape(1, -1)

    mlp = p["mlp"]
    kern1 = functools.partial(_fused_prep_regressor_kernel,
                              scale=float(dh) ** -0.5,
                              batch_size=b, n_tokens=n)
    kv_ln, scores, x_out = pl.pallas_call(
        kern1,
        out_shape=(jax.ShapeDtypeStruct((b * n, d), jnp.float32),
                   jax.ShapeDtypeStruct((b * n, hnq), jnp.float32),
                   jax.ShapeDtypeStruct((b, 1), jnp.float32)),
        compiler_params=pltpu.CompilerParams(
            vmem_limit_bytes=48 * 1024 * 1024),
    )(x2, p["reg_tokens"], repq, headmask,
      p["wq"], r2(p["bq"]), r2(p["ln_q_g"]), r2(p["ln_q_b"]),
      p["wkv"], r2(p["bkv"]), r2(p["ln_kv_g"]), r2(p["ln_kv_b"]),
      r2(p["reg_ln_g"]), r2(p["reg_ln_b"]),
      mlp["w1"], r2(mlp["b1"]), r2(mlp["ln1_g"]), r2(mlp["ln1_b"]),
      mlp["w2"], r2(mlp["b2"]), r2(mlp["ln2_g"]), r2(mlp["ln2_b"]),
      mlp["wh"], r2(mlp["bh"]))

    pair = p["pair"]
    kern2 = functools.partial(_pair_rank_attention_kernel,
                              n_query=nq, batch_size=b, n_tokens=n)
    operands = [
        scores, kv_ln, headmask,
        p["wo"], r2(p["bo"]),
        r2(pair["ln0_g"]), r2(pair["ln0_b"]),
        pair["w1"], r2(pair["b1"]), r2(pair["ln1_g"]), r2(pair["ln1_b"]),
        pair["w2"], r2(pair["b2"]), r2(pair["ln2_g"]), r2(pair["ln2_b"]),
        pair["w3"], r2(pair["b3"]), r2(pair["ln3_g"]), r2(pair["ln3_b"]),
        r2(pair["wh"]), r2(pair["bh"]),
    ]
    x_pair_3d = pl.pallas_call(
        kern2,
        grid=(b,),
        in_specs=[_const_spec(v.shape) for v in operands],
        out_specs=pl.BlockSpec((1, 1, b), lambda i: (i, 0, 0)),
        out_shape=jax.ShapeDtypeStruct((b, 1, b), jnp.float32),
        scratch_shapes=[pltpu.VMEM((b, d), jnp.float32)],
        compiler_params=pltpu.CompilerParams(
            dimension_semantics=("parallel",),
            vmem_limit_bytes=48 * 1024 * 1024),
    )(*operands)
    x_pair_diff = x_pair_3d.reshape(b * b, 1)

    return x_out, x_pair_diff


# ----------------------------------------------------------------------------
# Pure-JAX reference (mirrors the PyTorch forward; used for a numeric check)
# ----------------------------------------------------------------------------
def _reference_forward(x, p):
    b, n, d = x.shape
    h = p["num_heads"]
    dh = d // h
    nq = p["reg_tokens"].shape[0]
    scale = dh ** -0.5

    q = _layernorm(p["reg_tokens"] @ p["wq"] + p["bq"], p["ln_q_g"], p["ln_q_b"])
    qh = q.reshape(nq, h, dh).transpose(1, 0, 2)                      # (H, nq, dh)
    kv = _layernorm(x.reshape(b * n, d) @ p["wkv"] + p["bkv"],
                    p["ln_kv_g"], p["ln_kv_b"])
    kv = kv.reshape(b, n, h, dh).transpose(0, 2, 1, 3)                # (B, H, N, dh)

    kv_rep = jnp.repeat(kv, b, axis=0)                                # pair -> kv[i]
    kv_til = jnp.tile(kv, (b, 1, 1, 1))                               # pair -> kv[j]
    kv_cat = jnp.concatenate([kv_rep, kv_til], axis=2)                # (B*B, H, 2N, dh)
    qx = jnp.broadcast_to(qh[None], (b * b, h, nq, dh))
    s = jnp.einsum('bhqd,bhpd->bhqp', qx, kv_cat) * scale
    attn = jax.nn.softmax(s, axis=-1)
    v1 = jnp.einsum('bhqp,bhpd->bhqd', attn[..., :n], kv_cat[:, :, :n])
    v2 = jnp.einsum('bhqp,bhpd->bhqd', attn[..., n:], kv_cat[:, :, n:])
    vals = (v1 - v2).transpose(0, 2, 1, 3).reshape(b * b, nq, d)
    vals = vals @ p["wo"] + p["bo"]
    xp = vals.sum(axis=1)

    pr = p["pair"]
    y = _layernorm(xp, pr["ln0_g"], pr["ln0_b"])
    y = jax.nn.relu(_layernorm(y @ pr["w1"] + pr["b1"], pr["ln1_g"], pr["ln1_b"]))
    y = jax.nn.relu(_layernorm(y @ pr["w2"] + pr["b2"], pr["ln2_g"], pr["ln2_b"]))
    y = jax.nn.relu(_layernorm(y @ pr["w3"] + pr["b3"], pr["ln3_g"], pr["ln3_b"]))
    x_pair_diff = y @ pr["wh"] + pr["bh"]

    xm = _layernorm(x, p["reg_ln_g"], p["reg_ln_b"]).sum(axis=1)
    mp = p["mlp"]
    z = jax.nn.relu(_layernorm(xm @ mp["w1"] + mp["b1"], mp["ln1_g"], mp["ln1_b"]))
    z = jax.nn.relu(_layernorm(z @ mp["w2"] + mp["b2"], mp["ln2_g"], mp["ln2_b"]))
    x_out = z @ mp["wh"] + mp["bh"]
    return x_out, x_pair_diff


# ----------------------------------------------------------------------------
# Deterministic parameter init (shapes from the module __init__)
# ----------------------------------------------------------------------------
def _dense(key, din, dout):
    kw, kb = jax.random.split(key)
    w = jax.random.normal(kw, (din, dout), jnp.float32) * (1.0 / jnp.sqrt(din))
    b = jax.random.normal(kb, (dout,), jnp.float32) * 0.05
    return w, b


def init_params(key, d_model, n_reg_tokens=4, num_heads=8):
    ks = jax.random.split(key, 16)
    ones = jnp.ones((d_model,), jnp.float32)
    zeros = jnp.zeros((d_model,), jnp.float32)

    wq, bq = _dense(ks[0], d_model, d_model)
    wkv, bkv = _dense(ks[1], d_model, d_model)
    wo, bo = _dense(ks[2], d_model, d_model)

    def _block3(keys):
        p = {}
        p["ln0_g"], p["ln0_b"] = ones, zeros
        p["w1"], p["b1"] = _dense(keys[0], d_model, d_model)
        p["ln1_g"], p["ln1_b"] = ones, zeros
        p["w2"], p["b2"] = _dense(keys[1], d_model, d_model)
        p["ln2_g"], p["ln2_b"] = ones, zeros
        p["w3"], p["b3"] = _dense(keys[2], d_model, d_model)
        p["ln3_g"], p["ln3_b"] = ones, zeros
        p["wh"], p["bh"] = _dense(keys[3], d_model, 1)
        return p

    pair = _block3(jax.random.split(ks[3], 4))

    mk = jax.random.split(ks[4], 3)
    mlp = {}
    mlp["w1"], mlp["b1"] = _dense(mk[0], d_model, d_model)
    mlp["ln1_g"], mlp["ln1_b"] = ones, zeros
    mlp["w2"], mlp["b2"] = _dense(mk[1], d_model, d_model)
    mlp["ln2_g"], mlp["ln2_b"] = ones, zeros
    mlp["wh"], mlp["bh"] = _dense(mk[2], d_model, 1)

    reg_tokens = (d_model ** -0.5) * jax.random.normal(
        ks[5], (n_reg_tokens, d_model), jnp.float32)

    return {
        "num_heads": num_heads,
        "reg_tokens": reg_tokens,
        "wq": wq, "bq": bq, "ln_q_g": ones, "ln_q_b": zeros,
        "wkv": wkv, "bkv": bkv, "ln_kv_g": ones, "ln_kv_b": zeros,
        "wo": wo, "bo": bo,
        "pair": pair,
        "mlp": mlp,
        "reg_ln_g": ones, "reg_ln_b": zeros,
    }


# ----------------------------------------------------------------------------
if __name__ == "__main__":
    key = jax.random.PRNGKey(0)
    k_img, k_txt, k_par = jax.random.split(key, 3)

    B, N_VIS, N_TXT, D_MODEL = 2, 8, 6, 32
    image_embeddings = jax.random.normal(k_img, (B, N_VIS, D_MODEL), jnp.float32)
    text_embeddings = jax.random.normal(k_txt, (B, N_TXT, D_MODEL), jnp.float32)

    params = init_params(k_par, D_MODEL, n_reg_tokens=4, num_heads=8)

    x_out, x_pair_diff = rank_adapter_v2_forward(
        image_embeddings, text_embeddings, params)
    jax.block_until_ready((x_out, x_pair_diff))

    assert x_out.shape == (B, 1), x_out.shape
    assert x_pair_diff.shape == (B * B, 1), x_pair_diff.shape
    assert jnp.all(jnp.isfinite(x_out)) and jnp.all(jnp.isfinite(x_pair_diff))

    ref_out, ref_pair = _reference_forward(image_embeddings, params)
    assert jnp.allclose(x_out, ref_out, rtol=5e-2, atol=5e-2)
    assert jnp.allclose(x_pair_diff, ref_pair, rtol=5e-2, atol=5e-2)

    print("KERNEL_OK")
</pallas_src>

<mosaic_0001>
module attributes {stable_mosaic.version = 11 : i64} {
  func.func @_fused_prep_regressor_kernel(%arg0: memref<16x32xf32, #tpu.memory_space<vmem>>, %arg1: memref<4x32xf32, #tpu.memory_space<vmem>>, %arg2: memref<32x4xf32, #tpu.memory_space<vmem>>, %arg3: memref<32x32xf32, #tpu.memory_space<vmem>>, %arg4: memref<32x32xf32, #tpu.memory_space<vmem>>, %arg5: memref<1x32xf32, #tpu.memory_space<vmem>>, %arg6: memref<1x32xf32, #tpu.memory_space<vmem>>, %arg7: memref<1x32xf32, #tpu.memory_space<vmem>>, %arg8: memref<32x32xf32, #tpu.memory_space<vmem>>, %arg9: memref<1x32xf32, #tpu.memory_space<vmem>>, %arg10: memref<1x32xf32, #tpu.memory_space<vmem>>, %arg11: memref<1x32xf32, #tpu.memory_space<vmem>>, %arg12: memref<1x32xf32, #tpu.memory_space<vmem>>, %arg13: memref<1x32xf32, #tpu.memory_space<vmem>>, %arg14: memref<32x32xf32, #tpu.memory_space<vmem>>, %arg15: memref<1x32xf32, #tpu.memory_space<vmem>>, %arg16: memref<1x32xf32, #tpu.memory_space<vmem>>, %arg17: memref<1x32xf32, #tpu.memory_space<vmem>>, %arg18: memref<32x32xf32, #tpu.memory_space<vmem>>, %arg19: memref<1x32xf32, #tpu.memory_space<vmem>>, %arg20: memref<1x32xf32, #tpu.memory_space<vmem>>, %arg21: memref<1x32xf32, #tpu.memory_space<vmem>>, %arg22: memref<32x1xf32, #tpu.memory_space<vmem>>, %arg23: memref<1x1xf32, #tpu.memory_space<vmem>>, %arg24: memref<16x32xf32, #tpu.memory_space<vmem>>, %arg25: memref<16x32xf32, #tpu.memory_space<vmem>>, %arg26: memref<2x1xf32, #tpu.memory_space<vmem>>) attributes {dimension_semantics = [], scalar_prefetch = 0 : i64, scratch_operands = 0 : i64, tpu.core_type = #tpu.core_type<tc>} {
    %c0 = arith.constant 0 : index
    %c0_0 = arith.constant 0 : index
    %0 = vector.load %arg0[%c0, %c0_0] : memref<16x32xf32, #tpu.memory_space<vmem>>, vector<16x32xf32>
    %c0_1 = arith.constant 0 : index
    %c0_2 = arith.constant 0 : index
    %1 = vector.load %arg8[%c0_1, %c0_2] : memref<32x32xf32, #tpu.memory_space<vmem>>, vector<32x32xf32>
    %cst = arith.constant dense<0.000000e+00> : vector<16x32xf32>
    %2 = tpu.matmul %0, %1, %cst {dimension_numbers = #tpu.dot_dimension_numbers<[1], [0], [0], [1], [0, 0, 1, 1], [], []>} : vector<16x32xf32>, vector<32x32xf32>, vector<16x32xf32> -> vector<16x32xf32>
    %c0_3 = arith.constant 0 : index
    %c0_4 = arith.constant 0 : index
    %3 = vector.load %arg9[%c0_3, %c0_4] : memref<1x32xf32, #tpu.memory_space<vmem>>, vector<1x32xf32>
    %4 = vector.broadcast %3 : vector<1x32xf32> to vector<16x32xf32>
    %5 = arith.addf %2, %4 : vector<16x32xf32>
    %c0_5 = arith.constant 0 : index
    %c0_6 = arith.constant 0 : index
    %6 = vector.load %arg10[%c0_5, %c0_6] : memref<1x32xf32, #tpu.memory_space<vmem>>, vector<1x32xf32>
    %c0_7 = arith.constant 0 : index
    %c0_8 = arith.constant 0 : index
    %7 = vector.load %arg11[%c0_7, %c0_8] : memref<1x32xf32, #tpu.memory_space<vmem>>, vector<1x32xf32>
    %cst_9 = arith.constant dense<0.000000e+00> : vector<16xf32>
    %8 = vector.multi_reduction <add>, %5, %cst_9 [1] : vector<16x32xf32> to vector<16xf32>
    %9 = vector.shape_cast %8 : vector<16xf32> to vector<16x1xf32>
    %cst_10 = arith.constant 3.200000e+01 : f32
    %10 = vector.broadcast %cst_10 : f32 to vector<16x1xf32>
    %11 = arith.divf %9, %10 : vector<16x1xf32>
    %12 = vector.broadcast %11 : vector<16x1xf32> to vector<16x32xf32>
    %13 = arith.subf %5, %12 : vector<16x32xf32>
    %14 = arith.mulf %13, %13 : vector<16x32xf32>
    %cst_11 = arith.constant dense<0.000000e+00> : vector<16xf32>
    %15 = vector.multi_reduction <add>, %14, %cst_11 [1] : vector<16x32xf32> to vector<16xf32>
    %16 = vector.shape_cast %15 : vector<16xf32> to vector<16x1xf32>
    %cst_12 = arith.constant 3.200000e+01 : f32
    %17 = vector.broadcast %cst_12 : f32 to vector<16x1xf32>
    %18 = arith.divf %16, %17 : vector<16x1xf32>
    %cst_13 = arith.constant 9.99999974E-6 : f32
    %19 = vector.broadcast %cst_13 : f32 to vector<16x1xf32>
    %20 = arith.addf %18, %19 : vector<16x1xf32>
    %21 = math.rsqrt %20 : vector<16x1xf32>
    %22 = vector.broadcast %21 : vector<16x1xf32> to vector<16x32xf32>
    %23 = arith.mulf %13, %22 : vector<16x32xf32>
    %24 = vector.broadcast %6 : vector<1x32xf32> to vector<16x32xf32>
    %25 = arith.mulf %23, %24 : vector<16x32xf32>
    %26 = vector.broadcast %7 : vector<1x32xf32> to vector<16x32xf32>
    %27 = arith.addf %25, %26 : vector<16x32xf32>
    %c0_14 = arith.constant 0 : index
    %c0_15 = arith.constant 0 : index
    %28 = vector.load %arg24[%c0_14, %c0_15] : memref<16x32xf32, #tpu.memory_space<vmem>>, vector<16x32xf32>
    tpu.vector_store %arg24[%c0_14, %c0_15], %27 {strides = array<i32>} : memref<16x32xf32, #tpu.memory_space<vmem>>, vector<16x32xf32>,
    %c0_16 = arith.constant 0 : index
    %c0_17 = arith.constant 0 : index
    %29 = vector.load %arg1[%c0_16, %c0_17] : memref<4x32xf32, #tpu.memory_space<vmem>>, vector<4x32xf32>
    %c0_18 = arith.constant 0 : index
    %c0_19 = arith.constant 0 : index
    %30 = vector.load %arg4[%c0_18, %c0_19] : memref<32x32xf32, #tpu.memory_space<vmem>>, vector<32x32xf32>
    %cst_20 = arith.constant dense<0.000000e+00> : vector<4x32xf32>
    %31 = tpu.matmul %29, %30, %cst_20 {dimension_numbers = #tpu.dot_dimension_numbers<[1], [0], [0], [1], [0, 0, 1, 1], [], []>} : vector<4x32xf32>, vector<32x32xf32>, vector<4x32xf32> -> vector<4x32xf32>
    %c0_21 = arith.constant 0 : index
    %c0_22 = arith.constant 0 : index
    %32 = vector.load %arg5[%c0_21, %c0_22] : memref<1x32xf32, #tpu.memory_space<vmem>>, vector<1x32xf32>
    %33 = vector.broadcast %32 : vector<1x32xf32> to vector<4x32xf32>
    %34 = arith.addf %31, %33 : vector<4x32xf32>
    %c0_23 = arith.constant 0 : index
    %c0_24 = arith.constant 0 : index
    %35 = vector.load %arg6[%c0_23, %c0_24] : memref<1x32xf32, #tpu.memory_space<vmem>>, vector<1x32xf32>
    %c0_25 = arith.constant 0 : index
    %c0_26 = arith.constant 0 : index
    %36 = vector.load %arg7[%c0_25, %c0_26] : memref<1x32xf32, #tpu.memory_space<vmem>>, vector<1x32xf32>
    %cst_27 = arith.constant dense<0.000000e+00> : vector<4xf32>
    %37 = vector.multi_reduction <add>, %34, %cst_27 [1] : vector<4x32xf32> to vector<4xf32>
    %38 = vector.shape_cast %37 : vector<4xf32> to vector<4x1xf32>
    %cst_28 = arith.constant 3.200000e+01 : f32
    %39 = vector.broadcast %cst_28 : f32 to vector<4x1xf32>
    %40 = arith.divf %38, %39 : vector<4x1xf32>
    %41 = vector.broadcast %40 : vector<4x1xf32> to vector<4x32xf32>
    %42 = arith.subf %34, %41 : vector<4x32xf32>
    %43 = arith.mulf %42, %42 : vector<4x32xf32>
    %cst_29 = arith.constant dense<0.000000e+00> : vector<4xf32>
    %44 = vector.multi_reduction <add>, %43, %cst_29 [1] : vector<4x32xf32> to vector<4xf32>
    %45 = vector.shape_cast %44 : vector<4xf32> to vector<4x1xf32>
    %cst_30 = arith.constant 3.200000e+01 : f32
    %46 = vector.broadcast %cst_30 : f32 to vector<4x1xf32>
    %47 = arith.divf %45, %46 : vector<4x1xf32>
    %cst_31 = arith.constant 9.99999974E-6 : f32
    %48 = vector.broadcast %cst_31 : f32 to vector<4x1xf32>
    %49 = arith.addf %47, %48 : vector<4x1xf32>
    %50 = math.rsqrt %49 : vector<4x1xf32>
    %51 = vector.broadcast %50 : vector<4x1xf32> to vector<4x32xf32>
    %52 = arith.mulf %42, %51 : vector<4x32xf32>
    %53 = vector.broadcast %35 : vector<1x32xf32> to vector<4x32xf32>
    %54 = arith.mulf %52, %53 : vector<4x32xf32>
    %55 = vector.broadcast %36 : vector<1x32xf32> to vector<4x32xf32>
    %56 = arith.addf %54, %55 : vector<4x32xf32>
    %c0_32 = arith.constant 0 : index
    %c0_33 = arith.constant 0 : index
    %57 = vector.load %arg2[%c0_32, %c0_33] : memref<32x4xf32, #tpu.memory_space<vmem>>, vector<32x4xf32>
    %cst_34 = arith.constant dense<0.000000e+00> : vector<32x32xf32>
    %58 = tpu.matmul %57, %56, %cst_34 {dimension_numbers = #tpu.dot_dimension_numbers<[1], [0], [0], [1], [0, 0, 1, 1], [], []>} : vector<32x4xf32>, vector<4x32xf32>, vector<32x32xf32> -> vector<32x32xf32>
    %c0_35 = arith.constant 0 : index
    %c0_36 = arith.constant 0 : index
    %59 = vector.load %arg3[%c0_35, %c0_36] : memref<32x32xf32, #tpu.memory_space<vmem>>, vector<32x32xf32>
    %60 = arith.mulf %58, %59 : vector<32x32xf32>
    %cst_37 = arith.constant dense<0.000000e+00> : vector<16x32xf32>
    %61 = tpu.matmul %27, %60, %cst_37 {dimension_numbers = #tpu.dot_dimension_numbers<[1], [1], [0], [0], [0, 0, 1, 0], [], []>} : vector<16x32xf32>, vector<32x32xf32>, vector<16x32xf32> -> vector<16x32xf32>
    %cst_38 = arith.constant 5.000000e-01 : f32
    %62 = vector.broadcast %cst_38 : f32 to vector<16x32xf32>
    %63 = arith.mulf %62, %61 : vector<16x32xf32>
    %c0_39 = arith.constant 0 : index
    %c0_40 = arith.constant 0 : index
    %64 = vector.load %arg25[%c0_39, %c0_40] : memref<16x32xf32, #tpu.memory_space<vmem>>, vector<16x32xf32>
    tpu.vector_store %arg25[%c0_39, %c0_40], %63 {strides = array<i32>} : memref<16x32xf32, #tpu.memory_space<vmem>>, vector<16x32xf32>,
    %c0_41 = arith.constant 0 : index
    %c0_42 = arith.constant 0 : index
    %65 = vector.load %arg12[%c0_41, %c0_42] : memref<1x32xf32, #tpu.memory_space<vmem>>, vector<1x32xf32>
    %c0_43 = arith.constant 0 : index
    %c0_44 = arith.constant 0 : index
    %66 = vector.load %arg13[%c0_43, %c0_44] : memref<1x32xf32, #tpu.memory_space<vmem>>, vector<1x32xf32>
    %cst_45 = arith.constant dense<0.000000e+00> : vector<16xf32>
    %67 = vector.multi_reduction <add>, %0, %cst_45 [1] : vector<16x32xf32> to vector<16xf32>
    %68 = vector.shape_cast %67 : vector<16xf32> to vector<16x1xf32>
    %cst_46 = arith.constant 3.200000e+01 : f32
    %69 = vector.broadcast %cst_46 : f32 to vector<16x1xf32>
    %70 = arith.divf %68, %69 : vector<16x1xf32>
    %71 = vector.broadcast %70 : vector<16x1xf32> to vector<16x32xf32>
    %72 = arith.subf %0, %71 : vector<16x32xf32>
    %73 = arith.mulf %72, %72 : vector<16x32xf32>
    %cst_47 = arith.constant dense<0.000000e+00> : vector<16xf32>
    %74 = vector.multi_reduction <add>, %73, %cst_47 [1] : vector<16x32xf32> to vector<16xf32>
    %75 = vector.shape_cast %74 : vector<16xf32> to vector<16x1xf32>
    %cst_48 = arith.constant 3.200000e+01 : f32
    %76 = vector.broadcast %cst_48 : f32 to vector<16x1xf32>
    %77 = arith.divf %75, %76 : vector<16x1xf32>
    %cst_49 = arith.constant 9.99999974E-6 : f32
    %78 = vector.broadcast %cst_49 : f32 to vector<16x1xf32>
    %79 = arith.addf %77, %78 : vector<16x1xf32>
    %80 = math.rsqrt %79 : vector<16x1xf32>
    %81 = vector.broadcast %80 : vector<16x1xf32> to vector<16x32xf32>
    %82 = arith.mulf %72, %81 : vector<16x32xf32>
    %83 = vector.broadcast %65 : vector<1x32xf32> to vector<16x32xf32>
    %84 = arith.mulf %82, %83 : vector<16x32xf32>
    %85 = vector.broadcast %66 : vector<1x32xf32> to vector<16x32xf32>
    %86 = arith.addf %84, %85 : vector<16x32xf32>
    %87 = vector.shape_cast %86 : vector<16x32xf32> to vector<2x8x32xf32>
    %cst_50 = arith.constant dense<0.000000e+00> : vector<2x32xf32>
    %88 = vector.multi_reduction <add>, %87, %cst_50 [1] : vector<2x8x32xf32> to vector<2x32xf32>
    %c0_51 = arith.constant 0 : index
    %c0_52 = arith.constant 0 : index
    %89 = vector.load %arg14[%c0_51, %c0_52] : memref<32x32xf32, #tpu.memory_space<vmem>>, vector<32x32xf32>
    %cst_53 = arith.constant dense<0.000000e+00> : vector<2x32xf32>
    %90 = tpu.matmul %88, %89, %cst_53 {dimension_numbers = #tpu.dot_dimension_numbers<[1], [0], [0], [1], [0, 0, 1, 1], [], []>} : vector<2x32xf32>, vector<32x32xf32>, vector<2x32xf32> -> vector<2x32xf32>
    %c0_54 = arith.constant 0 : index
    %c0_55 = arith.constant 0 : index
    %91 = vector.load %arg15[%c0_54, %c0_55] : memref<1x32xf32, #tpu.memory_space<vmem>>, vector<1x32xf32>
    %92 = vector.broadcast %91 : vector<1x32xf32> to vector<2x32xf32>
    %93 = arith.addf %90, %92 : vector<2x32xf32>
    %c0_56 = arith.constant 0 : index
    %c0_57 = arith.constant 0 : index
    %94 = vector.load %arg16[%c0_56, %c0_57] : memref<1x32xf32, #tpu.memory_space<vmem>>, vector<1x32xf32>
    %c0_58 = arith.constant 0 : index
    %c0_59 = arith.constant 0 : index
    %95 = vector.load %arg17[%c0_58, %c0_59] : memref<1x32xf32, #tpu.memory_space<vmem>>, vector<1x32xf32>
    %cst_60 = arith.constant dense<0.000000e+00> : vector<2xf32>
    %96 = vector.multi_reduction <add>, %93, %cst_60 [1] : vector<2x32xf32> to vector<2xf32>
    %97 = vector.shape_cast %96 : vector<2xf32> to vector<2x1xf32>
    %cst_61 = arith.constant 3.200000e+01 : f32
    %98 = vector.broadcast %cst_61 : f32 to vector<2x1xf32>
    %99 = arith.divf %97, %98 : vector<2x1xf32>
    %100 = vector.broadcast %99 : vector<2x1xf32> to vector<2x32xf32>
    %101 = arith.subf %93, %100 : vector<2x32xf32>
    %102 = arith.mulf %101, %101 : vector<2x32xf32>
    %cst_62 = arith.constant dense<0.000000e+00> : vector<2xf32>
    %103 = vector.multi_reduction <add>, %102, %cst_62 [1] : vector<2x32xf32> to vector<2xf32>
    %104 = vector.shape_cast %103 : vector<2xf32> to vector<2x1xf32>
    %cst_63 = arith.constant 3.200000e+01 : f32
    %105 = vector.broadcast %cst_63 : f32 to vector<2x1xf32>
    %106 = arith.divf %104, %105 : vector<2x1xf32>
    %cst_64 = arith.constant 9.99999974E-6 : f32
    %107 = vector.broadcast %cst_64 : f32 to vector<2x1xf32>
    %108 = arith.addf %106, %107 : vector<2x1xf32>
    %109 = math.rsqrt %108 : vector<2x1xf32>
    %110 = vector.broadcast %109 : vector<2x1xf32> to vector<2x32xf32>
    %111 = arith.mulf %101, %110 : vector<2x32xf32>
    %112 = vector.broadcast %94 : vector<1x32xf32> to vector<2x32xf32>
    %113 = arith.mulf %111, %112 : vector<2x32xf32>
    %114 = vector.broadcast %95 : vector<1x32xf32> to vector<2x32xf32>
    %115 = arith.addf %113, %114 : vector<2x32xf32>
    %cst_65 = arith.constant 0.000000e+00 : f32
    %116 = vector.broadcast %cst_65 : f32 to vector<2x32xf32>
    %117 = arith.maximumf %115, %116 : vector<2x32xf32>
    %c0_66 = arith.constant 0 : index
    %c0_67 = arith.constant 0 : index
    %118 = vector.load %arg18[%c0_66, %c0_67] : memref<32x32xf32, #tpu.memory_space<vmem>>, vector<32x32xf32>
    %cst_68 = arith.constant dense<0.000000e+00> : vector<2x32xf32>
    %119 = tpu.matmul %117, %118, %cst_68 {dimension_numbers = #tpu.dot_dimension_numbers<[1], [0], [0], [1], [0, 0, 1, 1], [], []>} : vector<2x32xf32>, vector<32x32xf32>, vector<2x32xf32> -> vector<2x32xf32>
    %c0_69 = arith.constant 0 : index
    %c0_70 = arith.constant 0 : index
    %120 = vector.load %arg19[%c0_69, %c0_70] : memref<1x32xf32, #tpu.memory_space<vmem>>, vector<1x32xf32>
    %121 = vector.broadcast %120 : vector<1x32xf32> to vector<2x32xf32>
    %122 = arith.addf %119, %121 : vector<2x32xf32>
    %c0_71 = arith.constant 0 : index
    %c0_72 = arith.constant 0 : index
    %123 = vector.load %arg20[%c0_71, %c0_72] : memref<1x32xf32, #tpu.memory_space<vmem>>, vector<1x32xf32>
    %c0_73 = arith.constant 0 : index
    %c0_74 = arith.constant 0 : index
    %124 = vector.load %arg21[%c0_73, %c0_74] : memref<1x32xf32, #tpu.memory_space<vmem>>, vector<1x32xf32>
    %cst_75 = arith.constant dense<0.000000e+00> : vector<2xf32>
    %125 = vector.multi_reduction <add>, %122, %cst_75 [1] : vector<2x32xf32> to vector<2xf32>
    %126 = vector.shape_cast %125 : vector<2xf32> to vector<2x1xf32>
    %cst_76 = arith.constant 3.200000e+01 : f32
    %127 = vector.broadcast %cst_76 : f32 to vector<2x1xf32>
    %128 = arith.divf %126, %127 : vector<2x1xf32>
    %129 = vector.broadcast %128 : vector<2x1xf32> to vector<2x32xf32>
    %130 = arith.subf %122, %129 : vector<2x32xf32>
    %131 = arith.mulf %130, %130 : vector<2x32xf32>
    %cst_77 = arith.constant dense<0.000000e+00> : vector<2xf32>
    %132 = vector.multi_reduction <add>, %131, %cst_77 [1] : vector<2x32xf32> to vector<2xf32>
    %133 = vector.shape_cast %132 : vector<2xf32> to vector<2x1xf32>
    %cst_78 = arith.constant 3.200000e+01 : f32
    %134 = vector.broadcast %cst_78 : f32 to vector<2x1xf32>
    %135 = arith.divf %133, %134 : vector<2x1xf32>
    %cst_79 = arith.constant 9.99999974E-6 : f32
    %136 = vector.broadcast %cst_79 : f32 to vector<2x1xf32>
    %137 = arith.addf %135, %136 : vector<2x1xf32>
    %138 = math.rsqrt %137 : vector<2x1xf32>
    %139 = vector.broadcast %138 : vector<2x1xf32> to vector<2x32xf32>
    %140 = arith.mulf %130, %139 : vector<2x32xf32>
    %141 = vector.broadcast %123 : vector<1x32xf32> to vector<2x32xf32>
    %142 = arith.mulf %140, %141 : vector<2x32xf32>
    %143 = vector.broadcast %124 : vector<1x32xf32> to vector<2x32xf32>
    %144 = arith.addf %142, %143 : vector<2x32xf32>
    %cst_80 = arith.constant 0.000000e+00 : f32
    %145 = vector.broadcast %cst_80 : f32 to vector<2x32xf32>
    %146 = arith.maximumf %144, %145 : vector<2x32xf32>
    %c0_81 = arith.constant 0 : index
    %c0_82 = arith.constant 0 : index
    %147 = vector.load %arg22[%c0_81, %c0_82] : memref<32x1xf32, #tpu.memory_space<vmem>>, vector<32x1xf32>
    %cst_83 = arith.constant dense<0.000000e+00> : vector<2x1xf32>
    %148 = tpu.matmul %146, %147, %cst_83 {dimension_numbers = #tpu.dot_dimension_numbers<[1], [0], [0], [1], [0, 0, 1, 1], [], []>} : vector<2x32xf32>, vector<32x1xf32>, vector<2x1xf32> -> vector<2x1xf32>
    %c0_84 = arith.constant 0 : index
    %c0_85 = arith.constant 0 : index
    %149 = vector.load %arg23[%c0_84, %c0_85] : memref<1x1xf32, #tpu.memory_space<vmem>>, vector<1x1xf32>
    %150 = vector.broadcast %149 : vector<1x1xf32> to vector<2x1xf32>
    %151 = arith.addf %148, %150 : vector<2x1xf32>
    %c0_86 = arith.constant 0 : index
    %c0_87 = arith.constant 0 : index
    %152 = vector.load %arg26[%c0_86, %c0_87] : memref<2x1xf32, #tpu.memory_space<vmem>>, vector<2x1xf32>
    tpu.vector_store %arg26[%c0_86, %c0_87], %151 {strides = array<i32>} : memref<2x1xf32, #tpu.memory_space<vmem>>, vector<2x1xf32>,
    return
  }
}

</mosaic_0001>

<llo_original>
// kernel: tpu_custom_call.1
$region0: #{tpu_custom_call.1}
  #allocation0 [shape = 'u32[]', space=smem, size = 0x4, offset = 0x4, fixed_abs, tag = 'smem constant byte address 0x4 - core index']
  #allocation1 [shape = 'u32[144,128]{1,0:T(1,128)}', space=vmem, size = 0x12000, scoped, tag = 'internal scratch']
  #allocation2 [shape = 'f32[1,1]{1,0:T(1,128)S(1)}', space=vmem, size = 0x200, scoped, tag = 'scoped memory for tpu_custom_call.1']
  %s0 = inlined_call_operand.hbm [shape: f32[16,32], index: 0, kind: input, shape index: {}]
  %s1 = inlined_call_operand.hbm [shape: f32[4,32], index: 1, kind: input, shape index: {}]
  %s2 = inlined_call_operand.vmem [shape: f32[32,4], index: 2, kind: input, shape index: {}]
  %s3 = inlined_call_operand.vmem [shape: f32[32,32], index: 3, kind: input, shape index: {}]
  %s4 = inlined_call_operand.vmem [shape: f32[32,32], index: 4, kind: input, shape index: {}]
  %s5 = inlined_call_operand.vmem [shape: f32[1,32], index: 5, kind: input, shape index: {}]
  %s6 = inlined_call_operand.hbm [shape: f32[1,32], index: 6, kind: input, shape index: {}]
  %s7 = inlined_call_operand.hbm [shape: f32[1,32], index: 7, kind: input, shape index: {}]
  %s8 = inlined_call_operand.vmem [shape: f32[32,32], index: 8, kind: input, shape index: {}]
  %s9 = inlined_call_operand.hbm [shape: f32[1,32], index: 9, kind: input, shape index: {}]
  %s10 = inlined_call_operand.hbm [shape: f32[1,32], index: 10, kind: input, shape index: {}]
  %s11 = inlined_call_operand.hbm [shape: f32[1,32], index: 11, kind: input, shape index: {}]
  %s12 = inlined_call_operand.hbm [shape: f32[1,32], index: 12, kind: input, shape index: {}]
  %s13 = inlined_call_operand.hbm [shape: f32[1,32], index: 13, kind: input, shape index: {}]
  %s14 = inlined_call_operand.hbm [shape: f32[32,32], index: 14, kind: input, shape index: {}]
  %s15 = inlined_call_operand.hbm [shape: f32[1,32], index: 15, kind: input, shape index: {}]
  %s16 = inlined_call_operand.vmem [shape: f32[1,32], index: 16, kind: input, shape index: {}]
  %s17 = inlined_call_operand.vmem [shape: f32[1,32], index: 17, kind: input, shape index: {}]
  %s18 = inlined_call_operand.vmem [shape: f32[32,32], index: 18, kind: input, shape index: {}]
  %s19 = inlined_call_operand.vmem [shape: f32[1,32], index: 19, kind: input, shape index: {}]
  %s20 = inlined_call_operand.vmem [shape: f32[1,32], index: 20, kind: input, shape index: {}]
  %s21 = inlined_call_operand.vmem [shape: f32[1,32], index: 21, kind: input, shape index: {}]
  %s22 = inlined_call_operand.vmem [shape: f32[32,1], index: 22, kind: input, shape index: {}]
  %s23 = inlined_call_operand.<no memory space> [shape: f32[1,1], index: 23, kind: input, shape index: {}]
  %s24 = inlined_call_operand.hbm [shape: f32[16,32], index: 24, kind: output, shape index: {0}]
  %s25 = inlined_call_operand.hbm [shape: f32[16,32], index: 25, kind: output, shape index: {1}]
  %s26 = inlined_call_operand.vmem [shape: f32[2,1], index: 26, kind: output, shape index: {2}]
  %27 = xla_tuple %s24, %s25, %s26
  %s28 = sld [smem:[#allocation0]]
  $region166: #{tpu_custom_call.1} parent=0
    _
  %s30 = ssub.s32 1, %s28
  %s31 = scalar_select 0, %s30, %s28
  %v32 = vstv %s23
  %33 = vst [vmem:[#allocation2] sm:$0x1] %v32
  $region1: #{tpu_custom_call.1} parent=0
    #allocation3 [shape = 'u8[8192]{0}', space=vmem, size = 0x2000, scoped, tag = 'input window, operand 0, single buffered']
    #allocation4 [shape = 's32[1]{0}', space=sflag, size = 0x4, scoped, tag = 'scoped memory for tpu_custom_call.1']
    #allocation5 [shape = 's32[1]{0}', space=sflag, size = 0x4, scoped, tag = 'scoped memory for tpu_custom_call.1']
    #allocation6 [shape = 'u8[2048]{0}', space=vmem, size = 0x800, scoped, tag = 'input window, operand 1, single buffered']
    #allocation7 [shape = 's32[1]{0}', space=sflag, size = 0x4, scoped, tag = 'scoped memory for tpu_custom_call.1']
    #allocation8 [shape = 'u8[512]{0}', space=vmem, size = 0x400, scoped, tag = 'input window, operand 6, single buffered']
    #allocation9 [shape = 'u8[512]{0}', space=vmem, size = 0x400, scoped, tag = 'input window, operand 7, single buffered']
    #allocation10 [shape = 's32[1]{0}', space=sflag, size = 0x4, scoped, tag = 'scoped memory for tpu_custom_call.1']
    #allocation11 [shape = 'u8[512]{0}', space=vmem, size = 0x400, scoped, tag = 'input window, operand 9, single buffered']
    #allocation12 [shape = 'u8[512]{0}', space=vmem, size = 0x400, scoped, tag = 'input window, operand 10, single buffered']
    #allocation13 [shape = 's32[1]{0}', space=sflag, size = 0x4, scoped, tag = 'scoped memory for tpu_custom_call.1']
    #allocation14 [shape = 'u8[512]{0}', space=vmem, size = 0x400, scoped, tag = 'input window, operand 11, single buffered']
    #allocation15 [shape = 'u8[512]{0}', space=vmem, size = 0x400, scoped, tag = 'input window, operand 12, single buffered']
    #allocation16 [shape = 's32[1]{0}', space=sflag, size = 0x4, scoped, tag = 'scoped memory for tpu_custom_call.1']
    #allocation17 [shape = 'u8[512]{0}', space=vmem, size = 0x400, scoped, tag = 'input window, operand 13, single buffered']
    #allocation18 [shape = 'u8[16384]{0}', space=vmem, size = 0x4000, scoped, tag = 'input window, operand 14, single buffered']
    #allocation19 [shape = 's32[1]{0}', space=sflag, size = 0x4, scoped, tag = 'scoped memory for tpu_custom_call.1']
    #allocation20 [shape = 'u8[512]{0}', space=vmem, size = 0x400, scoped, tag = 'input window, operand 15, single buffered']
    #allocation21 [shape = 'u8[8192]{0}', space=vmem, size = 0x2000, scoped, tag = 'output window, operand 0, single buffered']
    #allocation22 [shape = 'u8[8192]{0}', space=vmem, size = 0x2000, scoped, tag = 'output window, operand 1, single buffered']
    #allocation23 [shape = 's32[1]{0}', space=sflag, size = 0x4, scoped, tag = 'scoped memory for tpu_custom_call.1']
    %34 = vsyncpa [#allocation4], 0
    %35 = vsyncpa [#allocation7], 0
    %36 = vsyncpa [#allocation10], 0
    %37 = vsyncpa [#allocation13], 0
    %38 = vsyncpa [#allocation16], 0
    %39 = vsyncpa [#allocation19], 0
    %40 = vsyncpa [#allocation5], 0
    %41 = vsyncpa [#allocation23], 0
    // Predicated region
    $region2: #{tpu_custom_call.1} parent=1 // pred_check
      _
    $region3: #{tpu_custom_call.1} parent=1 // pred_check_branch
      %43 = sbr.rel (0) target = $region5
    $region4: #{tpu_custom_call.1} parent=1 // pred_region
      %s45 = ssub.s32 256, 256
      %46 = vsyncadd [#allocation4], %s45
      %s47 = sshll.u32 [#allocation3], 4
      %s48 = int_to_ptr.vmem [resolvable:$true] %s47
      %53 = dma.hbm_to_vmem [thread:$0]  %s0, 256, %s48, [#allocation4], 128, 128, 8
    $region5: #{tpu_custom_call.1} parent=1 // pred_fallthru
      _
    // Predicated region
    $region6: #{tpu_custom_call.1} parent=1 // pred_check
      _
    $region7: #{tpu_custom_call.1} parent=1 // pred_check_branch
      %55 = sbr.rel (0) target = $region9
    $region8: #{tpu_custom_call.1} parent=1 // pred_region
      %s57 = ssub.s32 64, 64
      %58 = vsyncadd [#allocation7], %s57
      %s60 = sshll.u32 [#allocation6], 4
      %s61 = int_to_ptr.vmem [resolvable:$true] %s60
      %63 = dma.hbm_to_vmem [thread:$0]  %s1, 64, %s61, [#allocation7]
    $region9: #{tpu_custom_call.1} parent=1 // pred_fallthru
      _
    // Predicated region
    $region10: #{tpu_custom_call.1} parent=1 // pred_check
      _
    $region11: #{tpu_custom_call.1} parent=1 // pred_check_branch
      %65 = sbr.rel (0) target = $region13
    $region12: #{tpu_custom_call.1} parent=1 // pred_region
      _
    $region13: #{tpu_custom_call.1} parent=1 // pred_fallthru
      _
    // Predicated region
    $region14: #{tpu_custom_call.1} parent=1 // pred_check
      _
    $region15: #{tpu_custom_call.1} parent=1 // pred_check_branch
      %67 = sbr.rel (0) target = $region17
    $region16: #{tpu_custom_call.1} parent=1 // pred_region
      _
    $region17: #{tpu_custom_call.1} parent=1 // pred_fallthru
      _
    // Predicated region
    $region18: #{tpu_custom_call.1} parent=1 // pred_check
      _
    $region19: #{tpu_custom_call.1} parent=1 // pred_check_branch
      %69 = sbr.rel (0) target = $region21
    $region20: #{tpu_custom_call.1} parent=1 // pred_region
      _
    $region21: #{tpu_custom_call.1} parent=1 // pred_fallthru
      _
    // Predicated region
    $region22: #{tpu_custom_call.1} parent=1 // pred_check
      _
    $region23: #{tpu_custom_call.1} parent=1 // pred_check_branch
      %71 = sbr.rel (0) target = $region25
    $region24: #{tpu_custom_call.1} parent=1 // pred_region
      _
    $region25: #{tpu_custom_call.1} parent=1 // pred_fallthru
      _
    // Predicated region
    $region26: #{tpu_custom_call.1} parent=1 // pred_check
      _
    $region27: #{tpu_custom_call.1} parent=1 // pred_check_branch
      %73 = sbr.rel (0) target = $region29
    $region28: #{tpu_custom_call.1} parent=1 // pred_region
      %s75 = ssub.s32 16, 16
      %76 = vsyncadd [#allocation7], %s75
      %s78 = sshll.u32 [#allocation8], 4
      %s79 = int_to_ptr.vmem [resolvable:$true] %s78
      %81 = dma.hbm_to_vmem [thread:$0]  %s6, 16, %s79, [#allocation7]
    $region29: #{tpu_custom_call.1} parent=1 // pred_fallthru
      _
    // Predicated region
    $region30: #{tpu_custom_call.1} parent=1 // pred_check
      _
    $region31: #{tpu_custom_call.1} parent=1 // pred_check_branch
      %83 = sbr.rel (0) target = $region33
    $region32: #{tpu_custom_call.1} parent=1 // pred_region
      %s85 = ssub.s32 16, 16
      %86 = vsyncadd [#allocation10], %s85
      %s88 = sshll.u32 [#allocation9], 4
      %s89 = int_to_ptr.vmem [resolvable:$true] %s88
      %91 = dma.hbm_to_vmem [thread:$0]  %s7, 16, %s89, [#allocation10]
    $region33: #{tpu_custom_call.1} parent=1 // pred_fallthru
      _
    // Predicated region
    $region34: #{tpu_custom_call.1} parent=1 // pred_check
      _
    $region35: #{tpu_custom_call.1} parent=1 // pred_check_branch
      %93 = sbr.rel (0) target = $region37
    $region36: #{tpu_custom_call.1} parent=1 // pred_region
      _
    $region37: #{tpu_custom_call.1} parent=1 // pred_fallthru
      _
    // Predicated region
    $region38: #{tpu_custom_call.1} parent=1 // pred_check
      _
    $region39: #{tpu_custom_call.1} parent=1 // pred_check_branch
      %95 = sbr.rel (0) target = $region41
    $region40: #{tpu_custom_call.1} parent=1 // pred_region
      %s97 = ssub.s32 16, 16
      %98 = vsyncadd [#allocation10], %s97
      %s100 = sshll.u32 [#allocation11], 4
      %s101 = int_to_ptr.vmem [resolvable:$true] %s100
      %103 = dma.hbm_to_vmem [thread:$0]  %s9, 16, %s101, [#allocation10]
    $region41: #{tpu_custom_call.1} parent=1 // pred_fallthru
      _
    // Predicated region
    $region42: #{tpu_custom_call.1} parent=1 // pred_check
      _
    $region43: #{tpu_custom_call.1} parent=1 // pred_check_branch
      %105 = sbr.rel (0) target = $region45
    $region44: #{tpu_custom_call.1} parent=1 // pred_region
      %s107 = ssub.s32 16, 16
      %108 = vsyncadd [#allocation13], %s107
      %s110 = sshll.u32 [#allocation12], 4
      %s111 = int_to_ptr.vmem [resolvable:$true] %s110
      %113 = dma.hbm_to_vmem [thread:$0]  %s10, 16, %s111, [#allocation13]
    $region45: #{tpu_custom_call.1} parent=1 // pred_fallthru
      _
    // Predicated region
    $region46: #{tpu_custom_call.1} parent=1 // pred_check
      _
    $region47: #{tpu_custom_call.1} parent=1 // pred_check_branch
      %115 = sbr.rel (0) target = $region49
    $region48: #{tpu_custom_call.1} parent=1 // pred_region
      %s117 = ssub.s32 16, 16
      %118 = vsyncadd [#allocation13], %s117
      %s120 = sshll.u32 [#allocation14], 4
      %s121 = int_to_ptr.vmem [resolvable:$true] %s120
      %123 = dma.hbm_to_vmem [thread:$0]  %s11, 16, %s121, [#allocation13]
    $region49: #{tpu_custom_call.1} parent=1 // pred_fallthru
      _
    // Predicated region
    $region50: #{tpu_custom_call.1} parent=1 // pred_check
      _
    $region51: #{tpu_custom_call.1} parent=1 // pred_check_branch
      %125 = sbr.rel (0) target = $region53
    $region52: #{tpu_custom_call.1} parent=1 // pred_region
      %s127 = ssub.s32 16, 16
      %128 = vsyncadd [#allocation16], %s127
      %s130 = sshll.u32 [#allocation15], 4
      %s131 = int_to_ptr.vmem [resolvable:$true] %s130
      %133 = dma.hbm_to_vmem [thread:$0]  %s12, 16, %s131, [#allocation16]
    $region53: #{tpu_custom_call.1} parent=1 // pred_fallthru
      _
    // Predicated region
    $region54: #{tpu_custom_call.1} parent=1 // pred_check
      _
    $region55: #{tpu_custom_call.1} parent=1 // pred_check_branch
      %135 = sbr.rel (0) target = $region57
    $region56: #{tpu_custom_call.1} parent=1 // pred_region
      %s137 = ssub.s32 16, 16
      %138 = vsyncadd [#allocation16], %s137
      %s140 = sshll.u32 [#allocation17], 4
      %s141 = int_to_ptr.vmem [resolvable:$true] %s140
      %143 = dma.hbm_to_vmem [thread:$0]  %s13, 16, %s141, [#allocation16]
    $region57: #{tpu_custom_call.1} parent=1 // pred_fallthru
      _
    // Predicated region
    $region58: #{tpu_custom_call.1} parent=1 // pred_check
      _
    $region59: #{tpu_custom_call.1} parent=1 // pred_check_branch
      %145 = sbr.rel (0) target = $region61
    $region60: #{tpu_custom_call.1} parent=1 // pred_region
      %s147 = ssub.s32 512, 512
      %148 = vsyncadd [#allocation19], %s147
      %s149 = sshll.u32 [#allocation18], 4
      %s150 = int_to_ptr.vmem [resolvable:$true] %s149
      %155 = dma.hbm_to_vmem [thread:$0]  %s14, 512, %s150, [#allocation19], 128, 128, 8
    $region61: #{tpu_custom_call.1} parent=1 // pred_fallthru
      _
    // Predicated region
    $region62: #{tpu_custom_call.1} parent=1 // pred_check
      _
    $region63: #{tpu_custom_call.1} parent=1 // pred_check_branch
      %157 = sbr.rel (0) target = $region65
    $region64: #{tpu_custom_call.1} parent=1 // pred_region
      %s159 = ssub.s32 16, 16
      %160 = vsyncadd [#allocation19], %s159
      %s162 = sshll.u32 [#allocation20], 4
      %s163 = int_to_ptr.vmem [resolvable:$true] %s162
      %165 = dma.hbm_to_vmem [thread:$0]  %s15, 16, %s163, [#allocation19]
    $region65: #{tpu_custom_call.1} parent=1 // pred_fallthru
      _
    // Predicated region
    $region66: #{tpu_custom_call.1} parent=1 // pred_check
      _
    $region67: #{tpu_custom_call.1} parent=1 // pred_check_branch
      %167 = sbr.rel (0) target = $region69
    $region68: #{tpu_custom_call.1} parent=1 // pred_region
      _
    $region69: #{tpu_custom_call.1} parent=1 // pred_fallthru
      _
    // Predicated region
    $region70: #{tpu_custom_call.1} parent=1 // pred_check
      _
    $region71: #{tpu_custom_call.1} parent=1 // pred_check_branch
      %169 = sbr.rel (0) target = $region73
    $region72: #{tpu_custom_call.1} parent=1 // pred_region
      _
    $region73: #{tpu_custom_call.1} parent=1 // pred_fallthru
      _
    // Predicated region
    $region74: #{tpu_custom_call.1} parent=1 // pred_check
      _
    $region75: #{tpu_custom_call.1} parent=1 // pred_check_branch
      %171 = sbr.rel (0) target = $region77
    $region76: #{tpu_custom_call.1} parent=1 // pred_region
      _
    $region77: #{tpu_custom_call.1} parent=1 // pred_fallthru
      _
    // Predicated region
    $region78: #{tpu_custom_call.1} parent=1 // pred_check
      _
    $region79: #{tpu_custom_call.1} parent=1 // pred_check_branch
      %173 = sbr.rel (0) target = $region81
    $region80: #{tpu_custom_call.1} parent=1 // pred_region
      _
    $region81: #{tpu_custom_call.1} parent=1 // pred_fallthru
      _
    // Predicated region
    $region82: #{tpu_custom_call.1} parent=1 // pred_check
      _
    $region83: #{tpu_custom_call.1} parent=1 // pred_check_branch
      %175 = sbr.rel (0) target = $region85
    $region84: #{tpu_custom_call.1} parent=1 // pred_region
      _
    $region85: #{tpu_custom_call.1} parent=1 // pred_fallthru
      _
    // Predicated region
    $region86: #{tpu_custom_call.1} parent=1 // pred_check
      _
    $region87: #{tpu_custom_call.1} parent=1 // pred_check_branch
      %177 = sbr.rel (0) target = $region89
    $region88: #{tpu_custom_call.1} parent=1 // pred_region
      _
    $region89: #{tpu_custom_call.1} parent=1 // pred_fallthru
      _
    // Predicated region
    $region90: #{tpu_custom_call.1} parent=1 // pred_check
      _
    $region91: #{tpu_custom_call.1} parent=1 // pred_check_branch
      %179 = sbr.rel (0) target = $region93
    $region92: #{tpu_custom_call.1} parent=1 // pred_region
      _
    $region93: #{tpu_custom_call.1} parent=1 // pred_fallthru
      _
    // Predicated region
    $region94: #{tpu_custom_call.1} parent=1 // pred_check
      _
    $region95: #{tpu_custom_call.1} parent=1 // pred_check_branch
      %181 = sbr.rel (0) target = $region97
    $region96: #{tpu_custom_call.1} parent=1 // pred_region
      _
    $region97: #{tpu_custom_call.1} parent=1 // pred_fallthru
      _
    // Predicated region
    $region98: #{tpu_custom_call.1} parent=1 // pred_check
      _
    $region99: #{tpu_custom_call.1} parent=1 // pred_check_branch
      %183 = sbr.rel (0) target = $region101
    $region100: #{tpu_custom_call.1} parent=1 // pred_region
      %184 = dma.done [#allocation4], 256
    $region101: #{tpu_custom_call.1} parent=1 // pred_fallthru
      _
    // Predicated region
    $region102: #{tpu_custom_call.1} parent=1 // pred_check
      _
    $region103: #{tpu_custom_call.1} parent=1 // pred_check_branch
      %186 = sbr.rel (0) target = $region105
    $region104: #{tpu_custom_call.1} parent=1 // pred_region
      %187 = dma.done [#allocation7], 64
    $region105: #{tpu_custom_call.1} parent=1 // pred_fallthru
      _
    // Predicated region
    $region106: #{tpu_custom_call.1} parent=1 // pred_check
      _
    $region107: #{tpu_custom_call.1} parent=1 // pred_check_branch
      %189 = sbr.rel (0) target = $region109
    $region108: #{tpu_custom_call.1} parent=1 // pred_region
      %190 = dma.done [#allocation7], 16
    $region109: #{tpu_custom_call.1} parent=1 // pred_fallthru
      _
    // Predicated region
    $region110: #{tpu_custom_call.1} parent=1 // pred_check
      _
    $region111: #{tpu_custom_call.1} parent=1 // pred_check_branch
      %192 = sbr.rel (0) target = $region113
    $region112: #{tpu_custom_call.1} parent=1 // pred_region
      %193 = dma.done [#allocation10], 16
    $region113: #{tpu_custom_call.1} parent=1 // pred_fallthru
      _
    // Predicated region
    $region114: #{tpu_custom_call.1} parent=1 // pred_check
      _
    $region115: #{tpu_custom_call.1} parent=1 // pred_check_branch
      %195 = sbr.rel (0) target = $region117
    $region116: #{tpu_custom_call.1} parent=1 // pred_region
      %196 = dma.done [#allocation10], 16
    $region117: #{tpu_custom_call.1} parent=1 // pred_fallthru
      _
    // Predicated region
    $region118: #{tpu_custom_call.1} parent=1 // pred_check
      _
    $region119: #{tpu_custom_call.1} parent=1 // pred_check_branch
      %198 = sbr.rel (0) target = $region121
    $region120: #{tpu_custom_call.1} parent=1 // pred_region
      %199 = dma.done [#allocation13], 16
    $region121: #{tpu_custom_call.1} parent=1 // pred_fallthru
      _
    // Predicated region
    $region122: #{tpu_custom_call.1} parent=1 // pred_check
      _
    $region123: #{tpu_custom_call.1} parent=1 // pred_check_branch
      %201 = sbr.rel (0) target = $region125
    $region124: #{tpu_custom_call.1} parent=1 // pred_region
      %202 = dma.done [#allocation13], 16
    $region125: #{tpu_custom_call.1} parent=1 // pred_fallthru
      _
    // Predicated region
    $region126: #{tpu_custom_call.1} parent=1 // pred_check
      _
    $region127: #{tpu_custom_call.1} parent=1 // pred_check_branch
      %204 = sbr.rel (0) target = $region129
    $region128: #{tpu_custom_call.1} parent=1 // pred_region
      %205 = dma.done [#allocation16], 16
    $region129: #{tpu_custom_call.1} parent=1 // pred_fallthru
      _
    // Predicated region
    $region130: #{tpu_custom_call.1} parent=1 // pred_check
      _
    $region131: #{tpu_custom_call.1} parent=1 // pred_check_branch
      %207 = sbr.rel (0) target = $region133
    $region132: #{tpu_custom_call.1} parent=1 // pred_region
      %208 = dma.done [#allocation16], 16
    $region133: #{tpu_custom_call.1} parent=1 // pred_fallthru
      _
    // Predicated region
    $region134: #{tpu_custom_call.1} parent=1 // pred_check
      _
    $region135: #{tpu_custom_call.1} parent=1 // pred_check_branch
      %210 = sbr.rel (0) target = $region137
    $region136: #{tpu_custom_call.1} parent=1 // pred_region
      %211 = dma.done [#allocation19], 512
    $region137: #{tpu_custom_call.1} parent=1 // pred_fallthru
      _
    // Predicated region
    $region138: #{tpu_custom_call.1} parent=1 // pred_check
      _
    $region139: #{tpu_custom_call.1} parent=1 // pred_check_branch
      %213 = sbr.rel (0) target = $region141
    $region140: #{tpu_custom_call.1} parent=1 // pred_region
      %214 = dma.done [#allocation19], 16
    $region141: #{tpu_custom_call.1} parent=1 // pred_fallthru
      _
    %v215 = vld [vmem:[#allocation3] sm:$0xff]
    %v216 = vld [vmem:[#allocation3 + $0x8] sm:$0xff]
    %v217 = vld [vmem:[%s8] sm:$0xff]
    %v218 = vld [vmem:[%s8 + $0x8] sm:$0xff]
    %v219 = vld [vmem:[%s8 + $0x10] sm:$0xff]
    %v220 = vld [vmem:[%s8 + $0x18] sm:$0xff]
    %v221 = vld [vmem:[#allocation11] sm:$0x1]
    %v223 = vlaneseq
    %v224 = vshrl.u32 %v223, 7
    %v225 = vsub.s32 0, %v224
    %v226 = vrot.slane %v221, %v225
    %vm228 = vcmask 261120
    %v230 = vsel %vm228, %v215, 0
    %v233 = vsel %vm228, %v216, 0
    %235 = vmatprep.subr.mxu0 0.0
    %236 = vmatpush1.msra.mxu0 %v217
    %237 = vmatprep.subr.mxu0 0.0
    %238 = vmatpush1.msra.mxu0 %v218
    %239 = vmatprep.subr.mxu0 0.0
    %240 = vmatpush1.msra.mxu0 %v219
    %241 = vmatprep.subr.mxu0 0.0
    %242 = vmatpush1.msra.mxu0 %v220
    %243 = vmatprep.subr.mxu0 0.0
    %244 = vmatpush1.msra.mxu0 0.0
    %245 = vmatprep.subr.mxu0 0.0
    %246 = vmatpush1.msra.mxu0 0.0
    %247 = vmatprep.subr.mxu0 0.0
    %248 = vmatpush1.msra.mxu0 0.0
    %249 = vmatprep.subr.mxu0 0.0
    %250 = vmatpush1.msra.mxu0 0.0
    %251 = vmatprep.subr.mxu0 0.0
    %252 = vmatpush1.msra.mxu0 0.0
    %253 = vmatprep.subr.mxu0 0.0
    %254 = vmatpush1.msra.mxu0 0.0
    %255 = vmatprep.subr.mxu0 0.0
    %256 = vmatpush1.msra.mxu0 0.0
    %257 = vmatprep.subr.mxu0 0.0
    %258 = vmatpush1.msra.mxu0 0.0
    %259 = vmatprep.subr.mxu0 0.0
    %260 = vmatpush1.msra.mxu0 0.0
    %261 = vmatprep.subr.mxu0 0.0
    %262 = vmatpush1.msra.mxu0 0.0
    %263 = vmatprep.subr.mxu0 0.0
    %264 = vmatpush1.msra.mxu0 0.0
    %265 = vmatprep.subr.mxu0 0.0
    %266 = vmatpush1.msra.mxu0 0.0
    %267 = vmatprep.subr.mxu0 0.0
    %268 = vmatpush1.msra.mxu0 0.0
    %269 = vmatprep.subr.mxu0 0.0
    %270 = vmatpush1.msra.mxu0 0.0
    %271 = vmatprep.subr.mxu0 0.0
    %272 = vmatpush1.msra.mxu0 0.0
    %273 = vmatprep.subr.mxu0 0.0
    %274 = vmatpush1.msra.mxu0 0.0
    %275 = vmatprep.subr.mxu0 0.0
    %276 = vmatpush1.msra.mxu0 0.0
    %277 = vmatprep.subr.mxu0 0.0
    %278 = vmatpush1.msra.mxu0 0.0
    %279 = vmatprep.subr.mxu0 0.0
    %280 = vmatpush1.msra.mxu0 0.0
    %281 = vmatprep.subr.mxu0 0.0
    %282 = vmatpush1.msra.mxu0 0.0
    %283 = vmatprep.subr.mxu0 0.0
    %284 = vmatpush1.msra.mxu0 0.0
    %285 = vmatprep.subr.mxu0 0.0
    %286 = vmatpush1.msra.mxu0 0.0
    %287 = vmatprep.subr.mxu0 0.0
    %288 = vmatpush1.msra.mxu0 0.0
    %289 = vmatprep.subr.mxu0 0.0
    %290 = vmatpush1.msra.mxu0 0.0
    %291 = vmatprep.subr.mxu0 0.0
    %292 = vmatpush1.msra.mxu0 0.0
    %293 = vmatprep.subr.mxu0 0.0
    %294 = vmatpush1.msra.mxu0 0.0
    %295 = vmatprep.subr.mxu0 0.0
    %296 = vmatpush1.msra.mxu0 0.0
    %297 = vmatprep.subr.mxu0 0.0
    %298 = vmatpush1.msra.mxu0 0.0
    %299 = vmatprep.mubr.f32.mxu0 0.0
    %300 = vmatmul.mubr.f32.gmra.mrb[0].mxu0 %v230
    %v301 = vpop.f32.mrb[0].mxu0
    %v302 = vadd.f32 %v226, %v301
    %v303 = vpop.f32.mrb[0].mxu0
    %304 = vmatprep.mubr.f32.mxu0 0.0
    %305 = vmatmul.mubr.f32.gmra.mrb[0].mxu0 %v233
    %v306 = vpop.f32.mrb[0].mxu0
    %v307 = vadd.f32 %v226, %v306
    %v308 = vpop.f32.mrb[0].mxu0
    %309 = vdwg.mxu0
    %v310 = vld [vmem:[#allocation12] sm:$0x1]
    %v311 = vld [vmem:[#allocation14] sm:$0x1]
    %v312 = vsel %vm228, %v302, 0.0
    %313 = vadd.xlane.f32.xlu0 %v312
    %v314 = vpop.xlane.xlu0 %313
    %v315 = vsel %vm228, %v307, 0.0
    %316 = vadd.xlane.f32.xlu0 %v315
    %v317 = vpop.xlane.xlu0 %316
    %v318 = vrcp.pop 32.0
    %v319 = vmul.f32 %v314, %v318
    %v320 = vmul.f32 %v317, %v318
    %v321 = vsub.f32 %v302, %v319
    %v322 = vsub.f32 %v307, %v320
    %v323 = vmul.f32 %v321, %v321
    %v324 = vmul.f32 %v322, %v322
    %v325 = vsel %vm228, %v323, 0.0
    %326 = vadd.xlane.f32.xlu0 %v325
    %v327 = vpop.xlane.xlu0 %326
    %v328 = vsel %vm228, %v324, 0.0
    %329 = vadd.xlane.f32.xlu0 %v328
    %v330 = vpop.xlane.xlu0 %329
    %v331 = vmul.f32 %v327, %v318
    %v332 = vmul.f32 %v330, %v318
    %v333 = vadd.f32 %v331, 1e-05
    %v334 = vadd.f32 %v332, 1e-05
    %v335 = vrsqrt.pop %v333
    %v336 = vrsqrt.pop %v334
    %v337 = vmul.f32 %v321, %v335
    %v338 = vmul.f32 %v322, %v336
    %v340 = vlaneseq
    %v341 = vshrl.u32 %v340, 7
    %v342 = vsub.s32 0, %v341
    %v343 = vrot.slane %v310, %v342
    %v345 = vmul.f32 %v337, %v343
    %v346 = vmul.f32 %v338, %v343
    %v348 = vlaneseq
    %v349 = vshrl.u32 %v348, 7
    %v350 = vsub.s32 0, %v349
    %v351 = vrot.slane %v311, %v350
    %v353 = vadd.f32 %v345, %v351
    %v354 = vadd.f32 %v346, %v351
    %355 = vst.msk [vmem:[#allocation21] sm:$0xff] %vm228, %v353
    %356 = vst.msk [vmem:[#allocation21 + $0x8] sm:$0xff] %vm228, %v354
    %v357 = vld [vmem:[#allocation6] sm:$0xf]
    %v358 = vld [vmem:[%s4] sm:$0xff]
    %v359 = vld [vmem:[%s4 + $0x8] sm:$0xff]
    %v360 = vld [vmem:[%s4 + $0x10] sm:$0xff]
    %v361 = vld [vmem:[%s4 + $0x18] sm:$0xff]
    %v362 = vld [vmem:[%s5] sm:$0x1]
    %v364 = vlaneseq
    %v365 = vshrl.u32 %v364, 7
    %v366 = vsub.s32 0, %v365
    %v367 = vrot.slane %v362, %v366
    %v370 = vsel %vm228, %v357, 0
    %372 = vmatprep.subr.mxu0 0.0
    %373 = vmatpush1.msra.mxu0 %v358
    %374 = vmatprep.subr.mxu0 0.0
    %375 = vmatpush1.msra.mxu0 %v359
    %376 = vmatprep.subr.mxu0 0.0
    %377 = vmatpush1.msra.mxu0 %v360
    %378 = vmatprep.subr.mxu0 0.0
    %379 = vmatpush1.msra.mxu0 %v361
    %380 = vmatprep.subr.mxu0 0.0
    %381 = vmatpush1.msra.mxu0 0.0
    %382 = vmatprep.subr.mxu0 0.0
    %383 = vmatpush1.msra.mxu0 0.0
    %384 = vmatprep.subr.mxu0 0.0
    %385 = vmatpush1.msra.mxu0 0.0
    %386 = vmatprep.subr.mxu0 0.0
    %387 = vmatpush1.msra.mxu0 0.0
    %388 = vmatprep.subr.mxu0 0.0
    %389 = vmatpush1.msra.mxu0 0.0
    %390 = vmatprep.subr.mxu0 0.0
    %391 = vmatpush1.msra.mxu0 0.0
    %392 = vmatprep.subr.mxu0 0.0
    %393 = vmatpush1.msra.mxu0 0.0
    %394 = vmatprep.subr.mxu0 0.0
    %395 = vmatpush1.msra.mxu0 0.0
    %396 = vmatprep.subr.mxu0 0.0
    %397 = vmatpush1.msra.mxu0 0.0
    %398 = vmatprep.subr.mxu0 0.0
    %399 = vmatpush1.msra.mxu0 0.0
    %400 = vmatprep.subr.mxu0 0.0
    %401 = vmatpush1.msra.mxu0 0.0
    %402 = vmatprep.subr.mxu0 0.0
    %403 = vmatpush1.msra.mxu0 0.0
    %404 = vmatprep.subr.mxu0 0.0
    %405 = vmatpush1.msra.mxu0 0.0
    %406 = vmatprep.subr.mxu0 0.0
    %407 = vmatpush1.msra.mxu0 0.0
    %408 = vmatprep.subr.mxu0 0.0
    %409 = vmatpush1.msra.mxu0 0.0
    %410 = vmatprep.subr.mxu0 0.0
    %411 = vmatpush1.msra.mxu0 0.0
    %412 = vmatprep.subr.mxu0 0.0
    %413 = vmatpush1.msra.mxu0 0.0
    %414 = vmatprep.subr.mxu0 0.0
    %415 = vmatpush1.msra.mxu0 0.0
    %416 = vmatprep.subr.mxu0 0.0
    %417 = vmatpush1.msra.mxu0 0.0
    %418 = vmatprep.subr.mxu0 0.0
    %419 = vmatpush1.msra.mxu0 0.0
    %420 = vmatprep.subr.mxu0 0.0
    %421 = vmatpush1.msra.mxu0 0.0
    %422 = vmatprep.subr.mxu0 0.0
    %423 = vmatpush1.msra.mxu0 0.0
    %424 = vmatprep.subr.mxu0 0.0
    %425 = vmatpush1.msra.mxu0 0.0
    %426 = vmatprep.subr.mxu0 0.0
    %427 = vmatpush1.msra.mxu0 0.0
    %428 = vmatprep.subr.mxu0 0.0
    %429 = vmatpush1.msra.mxu0 0.0
    %430 = vmatprep.subr.mxu0 0.0
    %431 = vmatpush1.msra.mxu0 0.0
    %432 = vmatprep.subr.mxu0 0.0
    %433 = vmatpush1.msra.mxu0 0.0
    %434 = vmatprep.subr.mxu0 0.0
    %435 = vmatpush1.msra.mxu0 0.0
    %436 = vmatprep.mubr.f32.mxu0 0.0
    %437 = vmatmul.mubr.f32.gmra.mrb[0].mxu0 %v370
    %v438 = vpop.f32.mrb[0].mxu0
    %v439 = vadd.f32 %v367, %v438
    %v440 = vpop.f32.mrb[0].mxu0
    %441 = vdwg.mxu0
    %v442 = vld [vmem:[#allocation8] sm:$0x1]
    %v443 = vld [vmem:[#allocation9] sm:$0x1]
    %vm444 = vcmask 257024
    %v445 = vsel %vm444, %v439, 0.0
    %446 = vadd.xlane.f32.xlu0 %v445
    %v447 = vpop.xlane.xlu0 %446
    %v448 = vmul.f32 %v447, %v318
    %v449 = vsub.f32 %v439, %v448
    %v450 = vmul.f32 %v449, %v449
    %v451 = vsel %vm444, %v450, 0.0
    %452 = vadd.xlane.f32.xlu0 %v451
    %v453 = vpop.xlane.xlu0 %452
    %v454 = vmul.f32 %v453, %v318
    %v455 = vadd.f32 %v454, 1e-05
    %v456 = vrsqrt.pop %v455
    %v457 = vmul.f32 %v449, %v456
    %v459 = vlaneseq
    %v460 = vshrl.u32 %v459, 7
    %v461 = vsub.s32 0, %v460
    %v462 = vrot.slane %v442, %v461
    %v464 = vmul.f32 %v457, %v462
    %v466 = vlaneseq
    %v467 = vshrl.u32 %v466, 7
    %v468 = vsub.s32 0, %v467
    %v469 = vrot.slane %v443, %v468
    %v471 = vadd.f32 %v464, %v469
    %v472 = vld [vmem:[%s2] sm:$0xff]
    %v473 = vld [vmem:[%s2 + $0x8] sm:$0xff]
    %v474 = vld [vmem:[%s2 + $0x10] sm:$0xff]
    %v475 = vld [vmem:[%s2 + $0x18] sm:$0xff]
    %vm476 = vcmask 31744
    %v478 = vsel %vm476, %v472, 0
    %v481 = vsel %vm476, %v473, 0
    %v484 = vsel %vm476, %v474, 0
    %v487 = vsel %vm476, %v475, 0
    %vm489 = vcmask 1043456
    %v491 = vsel %vm489, %v471, 0
    %493 = vmatprep.subr.mxu0 0.0
    %494 = vmatpush1.msra.mxu0 %v491
    %495 = vmatprep.subr.mxu0 0.0
    %496 = vmatpush1.msra.mxu0 0.0
    %497 = vmatprep.subr.mxu0 0.0
    %498 = vmatpush1.msra.mxu0 0.0
    %499 = vmatprep.subr.mxu0 0.0
    %500 = vmatpush1.msra.mxu0 0.0
    %501 = vmatprep.subr.mxu0 0.0
    %502 = vmatpush1.msra.mxu0 0.0
    %503 = vmatprep.subr.mxu0 0.0
    %504 = vmatpush1.msra.mxu0 0.0
    %505 = vmatprep.subr.mxu0 0.0
    %506 = vmatpush1.msra.mxu0 0.0
    %507 = vmatprep.subr.mxu0 0.0
    %508 = vmatpush1.msra.mxu0 0.0
    %509 = vmatprep.subr.mxu0 0.0
    %510 = vmatpush1.msra.mxu0 0.0
    %511 = vmatprep.subr.mxu0 0.0
    %512 = vmatpush1.msra.mxu0 0.0
    %513 = vmatprep.subr.mxu0 0.0
    %514 = vmatpush1.msra.mxu0 0.0
    %515 = vmatprep.subr.mxu0 0.0
    %516 = vmatpush1.msra.mxu0 0.0
    %517 = vmatprep.subr.mxu0 0.0
    %518 = vmatpush1.msra.mxu0 0.0
    %519 = vmatprep.subr.mxu0 0.0
    %520 = vmatpush1.msra.mxu0 0.0
    %521 = vmatprep.subr.mxu0 0.0
    %522 = vmatpush1.msra.mxu0 0.0
    %523 = vmatprep.subr.mxu0 0.0
    %524 = vmatpush1.msra.mxu0 0.0
    %525 = vmatprep.subr.mxu0 0.0
    %526 = vmatpush1.msra.mxu0 0.0
    %527 = vmatprep.subr.mxu0 0.0
    %528 = vmatpush1.msra.mxu0 0.0
    %529 = vmatprep.subr.mxu0 0.0
    %530 = vmatpush1.msra.mxu0 0.0
    %531 = vmatprep.subr.mxu0 0.0
    %532 = vmatpush1.msra.mxu0 0.0
    %533 = vmatprep.subr.mxu0 0.0
    %534 = vmatpush1.msra.mxu0 0.0
    %535 = vmatprep.subr.mxu0 0.0
    %536 = vmatpush1.msra.mxu0 0.0
    %537 = vmatprep.subr.mxu0 0.0
    %538 = vmatpush1.msra.mxu0 0.0
    %539 = vmatprep.subr.mxu0 0.0
    %540 = vmatpush1.msra.mxu0 0.0
    %541 = vmatprep.subr.mxu0 0.0
    %542 = vmatpush1.msra.mxu0 0.0
    %543 = vmatprep.subr.mxu0 0.0
    %544 = vmatpush1.msra.mxu0 0.0
    %545 = vmatprep.subr.mxu0 0.0
    %546 = vmatpush1.msra.mxu0 0.0
    %547 = vmatprep.subr.mxu0 0.0
    %548 = vmatpush1.msra.mxu0 0.0
    %549 = vmatprep.subr.mxu0 0.0
    %550 = vmatpush1.msra.mxu0 0.0
    %551 = vmatprep.subr.mxu0 0.0
    %552 = vmatpush1.msra.mxu0 0.0
    %553 = vmatprep.subr.mxu0 0.0
    %554 = vmatpush1.msra.mxu0 0.0
    %555 = vmatprep.subr.mxu0 0.0
    %556 = vmatpush1.msra.mxu0 0.0
    %557 = vmatprep.mubr.f32.mxu0 0.0
    %558 = vmatmul.mubr.f32.gmra.mrb[0].mxu0 %v478
    %v559 = vpop.f32.mrb[0].mxu0
    %v560 = vadd.f32 0.0, %v559
    %v561 = vpop.f32.mrb[0].mxu0
    %562 = vmatprep.mubr.f32.mxu0 0.0
    %563 = vmatmul.mubr.f32.gmra.mrb[0].mxu0 %v481
    %v564 = vpop.f32.mrb[0].mxu0
    %v565 = vadd.f32 0.0, %v564
    %v566 = vpop.f32.mrb[0].mxu0
    %567 = vmatprep.mubr.f32.mxu0 0.0
    %568 = vmatmul.mubr.f32.gmra.mrb[0].mxu0 %v484
    %v569 = vpop.f32.mrb[0].mxu0
    %v570 = vadd.f32 0.0, %v569
    %v571 = vpop.f32.mrb[0].mxu0
    %572 = vmatprep.mubr.f32.mxu0 0.0
    %573 = vmatmul.mubr.f32.gmra.mrb[0].mxu0 %v487
    %v574 = vpop.f32.mrb[0].mxu0
    %v575 = vadd.f32 0.0, %v574
    %v576 = vpop.f32.mrb[0].mxu0
    %577 = vdwg.mxu0
    %v578 = vld [vmem:[%s3] sm:$0xff]
    %v579 = vld [vmem:[%s3 + $0x8] sm:$0xff]
    %v580 = vld [vmem:[%s3 + $0x10] sm:$0xff]
    %v581 = vld [vmem:[%s3 + $0x18] sm:$0xff]
    %v582 = vmul.f32 %v560, %v578
    %v583 = vmul.f32 %v565, %v579
    %v584 = vmul.f32 %v570, %v580
    %v585 = vmul.f32 %v575, %v581
    %v587 = vsel %vm228, %v353, 0
    %v590 = vsel %vm228, %v354, 0
    %v593 = vsel %vm228, %v582, 0
    %v596 = vsel %vm228, %v583, 0
    %v599 = vsel %vm228, %v584, 0
    %v602 = vsel %vm228, %v585, 0
    %604 = vmatprep.subr.mxu0 0.0
    %605 = vmatpush1.xpose.msra.mxu0 %v593
    %606 = vmatprep.subr.mxu0 0.0
    %607 = vmatpush1.xpose.msra.mxu0 %v596
    %608 = vmatprep.subr.mxu0 0.0
    %609 = vmatpush1.xpose.msra.mxu0 %v599
    %610 = vmatprep.subr.mxu0 0.0
    %611 = vmatpush1.xpose.msra.mxu0 %v602
    %612 = vmatprep.subr.mxu0 0.0
    %613 = vmatpush1.xpose.msra.mxu0 0.0
    %614 = vmatprep.subr.mxu0 0.0
    %615 = vmatpush1.xpose.msra.mxu0 0.0
    %616 = vmatprep.subr.mxu0 0.0
    %617 = vmatpush1.xpose.msra.mxu0 0.0
    %618 = vmatprep.subr.mxu0 0.0
    %619 = vmatpush1.xpose.msra.mxu0 0.0
    %620 = vmatprep.subr.mxu0 0.0
    %621 = vmatpush1.xpose.msra.mxu0 0.0
    %622 = vmatprep.subr.mxu0 0.0
    %623 = vmatpush1.xpose.msra.mxu0 0.0
    %624 = vmatprep.subr.mxu0 0.0
    %625 = vmatpush1.xpose.msra.mxu0 0.0
    %626 = vmatprep.subr.mxu0 0.0
    %627 = vmatpush1.xpose.msra.mxu0 0.0
    %628 = vmatprep.subr.mxu0 0.0
    %629 = vmatpush1.xpose.msra.mxu0 0.0
    %630 = vmatprep.subr.mxu0 0.0
    %631 = vmatpush1.xpose.msra.mxu0 0.0
    %632 = vmatprep.subr.mxu0 0.0
    %633 = vmatpush1.xpose.msra.mxu0 0.0
    %634 = vmatprep.subr.mxu0 0.0
    %635 = vmatpush1.xpose.msra.mxu0 0.0
    %636 = vmatprep.subr.mxu0 0.0
    %637 = vmatpush1.xpose.msra.mxu0 0.0
    %638 = vmatprep.subr.mxu0 0.0
    %639 = vmatpush1.xpose.msra.mxu0 0.0
    %640 = vmatprep.subr.mxu0 0.0
    %641 = vmatpush1.xpose.msra.mxu0 0.0
    %642 = vmatprep.subr.mxu0 0.0
    %643 = vmatpush1.xpose.msra.mxu0 0.0
    %644 = vmatprep.subr.mxu0 0.0
    %645 = vmatpush1.xpose.msra.mxu0 0.0
    %646 = vmatprep.subr.mxu0 0.0
    %647 = vmatpush1.xpose.msra.mxu0 0.0
    %648 = vmatprep.subr.mxu0 0.0
    %649 = vmatpush1.xpose.msra.mxu0 0.0
    %650 = vmatprep.subr.mxu0 0.0
    %651 = vmatpush1.xpose.msra.mxu0 0.0
    %652 = vmatprep.subr.mxu0 0.0
    %653 = vmatpush1.xpose.msra.mxu0 0.0
    %654 = vmatprep.subr.mxu0 0.0
    %655 = vmatpush1.xpose.msra.mxu0 0.0
    %656 = vmatprep.subr.mxu0 0.0
    %657 = vmatpush1.xpose.msra.mxu0 0.0
    %658 = vmatprep.subr.mxu0 0.0
    %659 = vmatpush1.xpose.msra.mxu0 0.0
    %660 = vmatprep.subr.mxu0 0.0
    %661 = vmatpush1.xpose.msra.mxu0 0.0
    %662 = vmatprep.subr.mxu0 0.0
    %663 = vmatpush1.xpose.msra.mxu0 0.0
    %664 = vmatprep.subr.mxu0 0.0
    %665 = vmatpush1.xpose.msra.mxu0 0.0
    %666 = vmatprep.subr.mxu0 0.0
    %667 = vmatpush1.xpose.msra.mxu0 0.0
    %668 = vmatprep.mubr.f32.mxu0 0.0
    %669 = vmatmul.mubr.f32.gmra.mrb[0].mxu0 %v587
    %v670 = vpop.f32.mrb[0].mxu0
    %v671 = vadd.f32 0.0, %v670
    %v672 = vpop.f32.mrb[0].mxu0
    %673 = vmatprep.mubr.f32.mxu0 0.0
    %674 = vmatmul.mubr.f32.gmra.mrb[0].mxu0 %v590
    %v675 = vpop.f32.mrb[0].mxu0
    %v676 = vadd.f32 0.0, %v675
    %v677 = vpop.f32.mrb[0].mxu0
    %678 = vdwg.mxu0
    %v679 = vmul.f32 %v671, 0.5
    %v680 = vmul.f32 %v676, 0.5
    %681 = vst.msk [vmem:[#allocation22] sm:$0xff] %vm228, %v679
    %682 = vst.msk [vmem:[#allocation22 + $0x8] sm:$0xff] %vm228, %v680
    %v683 = vld [vmem:[#allocation15] sm:$0x1]
    %v684 = vld [vmem:[#allocation17] sm:$0x1]
    %v685 = vsel %vm228, %v215, 0.0
    %686 = vadd.xlane.f32.xlu0 %v685
    %v687 = vpop.xlane.xlu0 %686
    %v688 = vsel %vm228, %v216, 0.0
    %689 = vadd.xlane.f32.xlu0 %v688
    %v690 = vpop.xlane.xlu0 %689
    %v691 = vmul.f32 %v687, %v318
    %v692 = vmul.f32 %v690, %v318
    %v693 = vsub.f32 %v215, %v691
    %v694 = vsub.f32 %v216, %v692
    %v695 = vmul.f32 %v693, %v693
    %v696 = vmul.f32 %v694, %v694
    %v697 = vsel %vm228, %v695, 0.0
    %698 = vadd.xlane.f32.xlu0 %v697
    %v699 = vpop.xlane.xlu0 %698
    %v700 = vsel %vm228, %v696, 0.0
    %701 = vadd.xlane.f32.xlu0 %v700
    %v702 = vpop.xlane.xlu0 %701
    %v703 = vmul.f32 %v699, %v318
    %v704 = vmul.f32 %v702, %v318
    %v705 = vadd.f32 %v703, 1e-05
    %v706 = vadd.f32 %v704, 1e-05
    %v707 = vrsqrt.pop %v705
    %v708 = vrsqrt.pop %v706
    %v709 = vmul.f32 %v693, %v707
    %v710 = vmul.f32 %v694, %v708
    %v712 = vlaneseq
    %v713 = vshrl.u32 %v712, 7
    %v714 = vsub.s32 0, %v713
    %v715 = vrot.slane %v683, %v714
    %v717 = vmul.f32 %v709, %v715
    %v718 = vmul.f32 %v710, %v715
    %v720 = vlaneseq
    %v721 = vshrl.u32 %v720, 7
    %v722 = vsub.s32 0, %v721
    %v723 = vrot.slane %v684, %v722
    %v725 = vadd.f32 %v717, %v723
    %v726 = vadd.f32 %v718, %v723
    %v727 = vsel %vm228, %v725, 0.0
    %v728 = vrot.slane %v727, 4
    %v729 = vadd.f32 %v727, %v728
    %v730 = vrot.slane %v729, 2
    %v731 = vadd.f32 %v729, %v730
    %v732 = vrot.slane %v731, 1
    %v733 = vadd.f32 %v731, %v732
    %v734 = vsel %vm228, %v726, 0.0
    %v735 = vrot.slane %v734, 4
    %v736 = vadd.f32 %v734, %v735
    %v737 = vrot.slane %v736, 2
    %v738 = vadd.f32 %v736, %v737
    %v739 = vrot.slane %v738, 1
    %v740 = vadd.f32 %v738, %v739
    %v741 = vld [vmem:[#allocation18] sm:$0xff]
    %v742 = vld [vmem:[#allocation18 + $0x8] sm:$0xff]
    %v743 = vld [vmem:[#allocation18 + $0x10] sm:$0xff]
    %v744 = vld [vmem:[#allocation18 + $0x18] sm:$0xff]
    %v745 = vld [vmem:[#allocation20] sm:$0x1]
    %v747 = vlaneseq
    %v748 = vshrl.u32 %v747, 7
    %v749 = vsub.s32 0, %v748
    %v750 = vrot.slane %v745, %v749
    %vm754 = vcmask 1041409
    %v755 = vsel %vm754, %v740, %v733
    %v756 = vsel %vm228, %v755, 0
    %758 = vmatprep.subr.mxu0 0.0
    %759 = vmatpush1.msra.mxu0 %v741
    %760 = vmatprep.subr.mxu0 0.0
    %761 = vmatpush1.msra.mxu0 %v742
    %762 = vmatprep.subr.mxu0 0.0
    %763 = vmatpush1.msra.mxu0 %v743
    %764 = vmatprep.subr.mxu0 0.0
    %765 = vmatpush1.msra.mxu0 %v744
    %766 = vmatprep.subr.mxu0 0.0
    %767 = vmatpush1.msra.mxu0 0.0
    %768 = vmatprep.subr.mxu0 0.0
    %769 = vmatpush1.msra.mxu0 0.0
    %770 = vmatprep.subr.mxu0 0.0
    %771 = vmatpush1.msra.mxu0 0.0
    %772 = vmatprep.subr.mxu0 0.0
    %773 = vmatpush1.msra.mxu0 0.0
    %774 = vmatprep.subr.mxu0 0.0
    %775 = vmatpush1.msra.mxu0 0.0
    %776 = vmatprep.subr.mxu0 0.0
    %777 = vmatpush1.msra.mxu0 0.0
    %778 = vmatprep.subr.mxu0 0.0
    %779 = vmatpush1.msra.mxu0 0.0
    %780 = vmatprep.subr.mxu0 0.0
    %781 = vmatpush1.msra.mxu0 0.0
    %782 = vmatprep.subr.mxu0 0.0
    %783 = vmatpush1.msra.mxu0 0.0
    %784 = vmatprep.subr.mxu0 0.0
    %785 = vmatpush1.msra.mxu0 0.0
    %786 = vmatprep.subr.mxu0 0.0
    %787 = vmatpush1.msra.mxu0 0.0
    %788 = vmatprep.subr.mxu0 0.0
    %789 = vmatpush1.msra.mxu0 0.0
    %790 = vmatprep.subr.mxu0 0.0
    %791 = vmatpush1.msra.mxu0 0.0
    %792 = vmatprep.subr.mxu0 0.0
    %793 = vmatpush1.msra.mxu0 0.0
    %794 = vmatprep.subr.mxu0 0.0
    %795 = vmatpush1.msra.mxu0 0.0
    %796 = vmatprep.subr.mxu0 0.0
    %797 = vmatpush1.msra.mxu0 0.0
    %798 = vmatprep.subr.mxu0 0.0
    %799 = vmatpush1.msra.mxu0 0.0
    %800 = vmatprep.subr.mxu0 0.0
    %801 = vmatpush1.msra.mxu0 0.0
    %802 = vmatprep.subr.mxu0 0.0
    %803 = vmatpush1.msra.mxu0 0.0
    %804 = vmatprep.subr.mxu0 0.0
    %805 = vmatpush1.msra.mxu0 0.0
    %806 = vmatprep.subr.mxu0 0.0
    %807 = vmatpush1.msra.mxu0 0.0
    %808 = vmatprep.subr.mxu0 0.0
    %809 = vmatpush1.msra.mxu0 0.0
    %810 = vmatprep.subr.mxu0 0.0
    %811 = vmatpush1.msra.mxu0 0.0
    %812 = vmatprep.subr.mxu0 0.0
    %813 = vmatpush1.msra.mxu0 0.0
    %814 = vmatprep.subr.mxu0 0.0
    %815 = vmatpush1.msra.mxu0 0.0
    %816 = vmatprep.subr.mxu0 0.0
    %817 = vmatpush1.msra.mxu0 0.0
    %818 = vmatprep.subr.mxu0 0.0
    %819 = vmatpush1.msra.mxu0 0.0
    %820 = vmatprep.subr.mxu0 0.0
    %821 = vmatpush1.msra.mxu0 0.0
    %822 = vmatprep.mubr.f32.mxu0 0.0
    %823 = vmatmul.mubr.f32.gmra.mrb[0].mxu0 %v756
    %v824 = vpop.f32.mrb[0].mxu0
    %v825 = vadd.f32 %v750, %v824
    %v826 = vpop.f32.mrb[0].mxu0
    %827 = vdwg.mxu0
    %v828 = vld [vmem:[%s16] sm:$0x1]
    %v829 = vld [vmem:[%s17] sm:$0x1]
    %vm830 = vcmask 254976
    %v831 = vsel %vm830, %v825, 0.0
    %832 = vadd.xlane.f32.xlu0 %v831
    %v833 = vpop.xlane.xlu0 %832
    %v834 = vmul.f32 %v833, %v318
    %v835 = vsub.f32 %v825, %v834
    %v836 = vmul.f32 %v835, %v835
    %v837 = vsel %vm830, %v836, 0.0
    %838 = vadd.xlane.f32.xlu0 %v837
    %v839 = vpop.xlane.xlu0 %838
    %v840 = vmul.f32 %v839, %v318
    %v841 = vadd.f32 %v840, 1e-05
    %v842 = vrsqrt.pop %v841
    %v843 = vmul.f32 %v835, %v842
    %v845 = vlaneseq
    %v846 = vshrl.u32 %v845, 7
    %v847 = vsub.s32 0, %v846
    %v848 = vrot.slane %v828, %v847
    %v850 = vmul.f32 %v843, %v848
    %v852 = vlaneseq
    %v853 = vshrl.u32 %v852, 7
    %v854 = vsub.s32 0, %v853
    %v855 = vrot.slane %v829, %v854
    %v857 = vadd.f32 %v850, %v855
    %v858 = vmax.f32 %v857, 0.0
    %v859 = vld [vmem:[%s18] sm:$0xff]
    %v860 = vld [vmem:[%s18 + $0x8] sm:$0xff]
    %v861 = vld [vmem:[%s18 + $0x10] sm:$0xff]
    %v862 = vld [vmem:[%s18 + $0x18] sm:$0xff]
    %v863 = vld [vmem:[%s19] sm:$0x1]
    %v865 = vlaneseq
    %v866 = vshrl.u32 %v865, 7
    %v867 = vsub.s32 0, %v866
    %v868 = vrot.slane %v863, %v867
    %v871 = vsel %vm228, %v858, 0
    %873 = vmatprep.subr.mxu0 0.0
    %874 = vmatpush1.msra.mxu0 %v859
    %875 = vmatprep.subr.mxu0 0.0
    %876 = vmatpush1.msra.mxu0 %v860
    %877 = vmatprep.subr.mxu0 0.0
    %878 = vmatpush1.msra.mxu0 %v861
    %879 = vmatprep.subr.mxu0 0.0
    %880 = vmatpush1.msra.mxu0 %v862
    %881 = vmatprep.subr.mxu0 0.0
    %882 = vmatpush1.msra.mxu0 0.0
    %883 = vmatprep.subr.mxu0 0.0
    %884 = vmatpush1.msra.mxu0 0.0
    %885 = vmatprep.subr.mxu0 0.0
    %886 = vmatpush1.msra.mxu0 0.0
    %887 = vmatprep.subr.mxu0 0.0
    %888 = vmatpush1.msra.mxu0 0.0
    %889 = vmatprep.subr.mxu0 0.0
    %890 = vmatpush1.msra.mxu0 0.0
    %891 = vmatprep.subr.mxu0 0.0
    %892 = vmatpush1.msra.mxu0 0.0
    %893 = vmatprep.subr.mxu0 0.0
    %894 = vmatpush1.msra.mxu0 0.0
    %895 = vmatprep.subr.mxu0 0.0
    %896 = vmatpush1.msra.mxu0 0.0
    %897 = vmatprep.subr.mxu0 0.0
    %898 = vmatpush1.msra.mxu0 0.0
    %899 = vmatprep.subr.mxu0 0.0
    %900 = vmatpush1.msra.mxu0 0.0
    %901 = vmatprep.subr.mxu0 0.0
    %902 = vmatpush1.msra.mxu0 0.0
    %903 = vmatprep.subr.mxu0 0.0
    %904 = vmatpush1.msra.mxu0 0.0
    %905 = vmatprep.subr.mxu0 0.0
    %906 = vmatpush1.msra.mxu0 0.0
    %907 = vmatprep.subr.mxu0 0.0
    %908 = vmatpush1.msra.mxu0 0.0
    %909 = vmatprep.subr.mxu0 0.0
    %910 = vmatpush1.msra.mxu0 0.0
    %911 = vmatprep.subr.mxu0 0.0
    %912 = vmatpush1.msra.mxu0 0.0
    %913 = vmatprep.subr.mxu0 0.0
    %914 = vmatpush1.msra.mxu0 0.0
    %915 = vmatprep.subr.mxu0 0.0
    %916 = vmatpush1.msra.mxu0 0.0
    %917 = vmatprep.subr.mxu0 0.0
    %918 = vmatpush1.msra.mxu0 0.0
    %919 = vmatprep.subr.mxu0 0.0
    %920 = vmatpush1.msra.mxu0 0.0
    %921 = vmatprep.subr.mxu0 0.0
    %922 = vmatpush1.msra.mxu0 0.0
    %923 = vmatprep.subr.mxu0 0.0
    %924 = vmatpush1.msra.mxu0 0.0
    %925 = vmatprep.subr.mxu0 0.0
    %926 = vmatpush1.msra.mxu0 0.0
    %927 = vmatprep.subr.mxu0 0.0
    %928 = vmatpush1.msra.mxu0 0.0
    %929 = vmatprep.subr.mxu0 0.0
    %930 = vmatpush1.msra.mxu0 0.0
    %931 = vmatprep.subr.mxu0 0.0
    %932 = vmatpush1.msra.mxu0 0.0
    %933 = vmatprep.subr.mxu0 0.0
    %934 = vmatpush1.msra.mxu0 0.0
    %935 = vmatprep.subr.mxu0 0.0
    %936 = vmatpush1.msra.mxu0 0.0
    %937 = vmatprep.mubr.f32.mxu0 0.0
    %938 = vmatmul.mubr.f32.gmra.mrb[0].mxu0 %v871
    %v939 = vpop.f32.mrb[0].mxu0
    %v940 = vadd.f32 %v868, %v939
    %v941 = vpop.f32.mrb[0].mxu0
    %942 = vdwg.mxu0
    %v943 = vld [vmem:[%s20] sm:$0x1]
    %v944 = vld [vmem:[%s21] sm:$0x1]
    %v945 = vsel %vm830, %v940, 0.0
    %946 = vadd.xlane.f32.xlu0 %v945
    %v947 = vpop.xlane.xlu0 %946
    %v948 = vmul.f32 %v947, %v318
    %v949 = vsub.f32 %v940, %v948
    %v950 = vmul.f32 %v949, %v949
    %v951 = vsel %vm830, %v950, 0.0
    %952 = vadd.xlane.f32.xlu0 %v951
    %v953 = vpop.xlane.xlu0 %952
    %v954 = vmul.f32 %v953, %v318
    %v955 = vadd.f32 %v954, 1e-05
    %v956 = vrsqrt.pop %v955
    %v957 = vmul.f32 %v949, %v956
    %v959 = vlaneseq
    %v960 = vshrl.u32 %v959, 7
    %v961 = vsub.s32 0, %v960
    %v962 = vrot.slane %v943, %v961
    %v964 = vmul.f32 %v957, %v962
    %v966 = vlaneseq
    %v967 = vshrl.u32 %v966, 7
    %v968 = vsub.s32 0, %v967
    %v969 = vrot.slane %v944, %v968
    %v971 = vadd.f32 %v964, %v969
    %v972 = vmax.f32 %v971, 0.0
    %v973 = vld [vmem:[%s22] sm:$0xff]
    %v974 = vld [vmem:[%s22 + $0x8] sm:$0xff]
    %v975 = vld [vmem:[%s22 + $0x10] sm:$0xff]
    %v976 = vld [vmem:[%s22 + $0x18] sm:$0xff]
    %v977 = vld [vmem:[#allocation2] sm:$0x1]
    %v979 = vlaneseq
    %v980 = vshrl.u32 %v979, 7
    %v981 = vsub.s32 0, %v980
    %v982 = vrot.slane %v977, %v981
    %v985 = vsel %vm228, %v972, 0
    %987 = vmatprep.subr.mxu0 0.0
    %988 = vmatpush1.msra.mxu0 %v973
    %989 = vmatprep.subr.mxu0 0.0
    %990 = vmatpush1.msra.mxu0 %v974
    %991 = vmatprep.subr.mxu0 0.0
    %992 = vmatpush1.msra.mxu0 %v975
    %993 = vmatprep.subr.mxu0 0.0
    %994 = vmatpush1.msra.mxu0 %v976
    %995 = vmatprep.subr.mxu0 0.0
    %996 = vmatpush1.msra.mxu0 0.0
    %997 = vmatprep.subr.mxu0 0.0
    %998 = vmatpush1.msra.mxu0 0.0
    %999 = vmatprep.subr.mxu0 0.0
    %1000 = vmatpush1.msra.mxu0 0.0
    %1001 = vmatprep.subr.mxu0 0.0
    %1002 = vmatpush1.msra.mxu0 0.0
    %1003 = vmatprep.subr.mxu0 0.0
    %1004 = vmatpush1.msra.mxu0 0.0
    %1005 = vmatprep.subr.mxu0 0.0
    %1006 = vmatpush1.msra.mxu0 0.0
    %1007 = vmatprep.subr.mxu0 0.0
    %1008 = vmatpush1.msra.mxu0 0.0
    %1009 = vmatprep.subr.mxu0 0.0
    %1010 = vmatpush1.msra.mxu0 0.0
    %1011 = vmatprep.subr.mxu0 0.0
    %1012 = vmatpush1.msra.mxu0 0.0
    %1013 = vmatprep.subr.mxu0 0.0
    %1014 = vmatpush1.msra.mxu0 0.0
    %1015 = vmatprep.subr.mxu0 0.0
    %1016 = vmatpush1.msra.mxu0 0.0
    %1017 = vmatprep.subr.mxu0 0.0
    %1018 = vmatpush1.msra.mxu0 0.0
    %1019 = vmatprep.subr.mxu0 0.0
    %1020 = vmatpush1.msra.mxu0 0.0
    %1021 = vmatprep.subr.mxu0 0.0
    %1022 = vmatpush1.msra.mxu0 0.0
    %1023 = vmatprep.subr.mxu0 0.0
    %1024 = vmatpush1.msra.mxu0 0.0
    %1025 = vmatprep.subr.mxu0 0.0
    %1026 = vmatpush1.msra.mxu0 0.0
    %1027 = vmatprep.subr.mxu0 0.0
    %1028 = vmatpush1.msra.mxu0 0.0
    %1029 = vmatprep.subr.mxu0 0.0
    %1030 = vmatpush1.msra.mxu0 0.0
    %1031 = vmatprep.subr.mxu0 0.0
    %1032 = vmatpush1.msra.mxu0 0.0
    %1033 = vmatprep.subr.mxu0 0.0
    %1034 = vmatpush1.msra.mxu0 0.0
    %1035 = vmatprep.subr.mxu0 0.0
    %1036 = vmatpush1.msra.mxu0 0.0
    %1037 = vmatprep.subr.mxu0 0.0
    %1038 = vmatpush1.msra.mxu0 0.0
    %1039 = vmatprep.subr.mxu0 0.0
    %1040 = vmatpush1.msra.mxu0 0.0
    %1041 = vmatprep.subr.mxu0 0.0
    %1042 = vmatpush1.msra.mxu0 0.0
    %1043 = vmatprep.subr.mxu0 0.0
    %1044 = vmatpush1.msra.mxu0 0.0
    %1045 = vmatprep.subr.mxu0 0.0
    %1046 = vmatpush1.msra.mxu0 0.0
    %1047 = vmatprep.subr.mxu0 0.0
    %1048 = vmatpush1.msra.mxu0 0.0
    %1049 = vmatprep.subr.mxu0 0.0
    %1050 = vmatpush1.msra.mxu0 0.0
    %1051 = vmatprep.mubr.f32.mxu0 0.0
    %1052 = vmatmul.mubr.f32.gmra.mrb[0].mxu0 %v985
    %v1053 = vpop.f32.mrb[0].mxu0
    %v1054 = vadd.f32 %v982, %v1053
    %v1055 = vpop.f32.mrb[0].mxu0
    %1056 = vdwg.mxu0
    %vm1057 = vcmask 1024
    %1058 = vst.msk [vmem:[%s26] sm:$0x3] %vm1057, %v1054
    // Predicated region
    $region142: #{tpu_custom_call.1} parent=1 // pred_check
      _
    $region143: #{tpu_custom_call.1} parent=1 // pred_check_branch
      %1060 = sbr.rel (0) target = $region145
    $region144: #{tpu_custom_call.1} parent=1 // pred_region
      %s1062 = ssub.s32 256, 256
      %1063 = vsyncadd [#allocation5], %s1062
      %s1064 = sshll.u32 [#allocation21], 4
      %s1065 = int_to_ptr.vmem [resolvable:$true] %s1064
      %1070 = dma.vmem_to_hbm [thread:$0]  %s1065, 256, %s24, [#allocation5], 128, 128, 8
    $region145: #{tpu_custom_call.1} parent=1 // pred_fallthru
      _
    // Predicated region
    $region146: #{tpu_custom_call.1} parent=1 // pred_check
      _
    $region147: #{tpu_custom_call.1} parent=1 // pred_check_branch
      %1072 = sbr.rel (0) target = $region149
    $region148: #{tpu_custom_call.1} parent=1 // pred_region
      %s1074 = ssub.s32 256, 256
      %1075 = vsyncadd [#allocation23], %s1074
      %s1076 = sshll.u32 [#allocation22], 4
      %s1077 = int_to_ptr.vmem [resolvable:$true] %s1076
      %1082 = dma.vmem_to_hbm [thread:$0]  %s1077, 256, %s25, [#allocation23], 128, 128, 8
    $region149: #{tpu_custom_call.1} parent=1 // pred_fallthru
      _
    // Predicated region
    $region150: #{tpu_custom_call.1} parent=1 // pred_check
      _
    $region151: #{tpu_custom_call.1} parent=1 // pred_check_branch
      %1084 = sbr.rel (0) target = $region153
    $region152: #{tpu_custom_call.1} parent=1 // pred_region
      _
    $region153: #{tpu_custom_call.1} parent=1 // pred_fallthru
      _
    // Predicated region
    $region154: #{tpu_custom_call.1} parent=1 // pred_check
      _
    $region155: #{tpu_custom_call.1} parent=1 // pred_check_branch
      %1086 = sbr.rel (0) target = $region157
    $region156: #{tpu_custom_call.1} parent=1 // pred_region
      %1087 = dma.done [#allocation5], 256
    $region157: #{tpu_custom_call.1} parent=1 // pred_fallthru
      _
    // Predicated region
    $region158: #{tpu_custom_call.1} parent=1 // pred_check
      _
    $region159: #{tpu_custom_call.1} parent=1 // pred_check_branch
      %1089 = sbr.rel (0) target = $region161
    $region160: #{tpu_custom_call.1} parent=1 // pred_region
      %1090 = dma.done [#allocation23], 256
    $region161: #{tpu_custom_call.1} parent=1 // pred_fallthru
      _
    // Predicated region
    $region162: #{tpu_custom_call.1} parent=1 // pred_check
      _
    $region163: #{tpu_custom_call.1} parent=1 // pred_check_branch
      %1092 = sbr.rel (0) target = $region165
    $region164: #{tpu_custom_call.1} parent=1 // pred_region
      _
    $region165: #{tpu_custom_call.1} parent=1 // pred_fallthru
      _
    %1093 = vsyncpa [#allocation4], 1
    %1094 = vsyncpa [#allocation7], 1
    %1095 = vsyncpa [#allocation10], 1
    %1096 = vsyncpa [#allocation13], 1
    %1097 = vsyncpa [#allocation16], 1
    %1098 = vsyncpa [#allocation19], 1
    %1099 = vsyncpa [#allocation5], 1
    %1100 = vsyncpa [#allocation23], 1

</llo_original>
